<compile_context>
chip_gen: v6e
topology: v6e:2x2x1
jax: 0.10.0
libtpu: 0.0.40
codegen_flags: <defaults>
</compile_context>

<pallas_src>
import jax
import jax.numpy as jnp
import numpy as np
from jax import lax
from jax.experimental import pallas as pl
from jax.experimental.pallas import tpu as pltpu


# ----------------------------------------------------------------------------
# small helpers
# ----------------------------------------------------------------------------
def _round_up(n, m):
    return ((n + m - 1) // m) * m


def _pad_axis(a, size, axis):
    pad = size - a.shape[axis]
    if pad <= 0:
        return a
    widths = [(0, 0)] * a.ndim
    widths[axis] = (0, pad)
    return jnp.pad(a, widths)


# ----------------------------------------------------------------------------
# Pallas kernels: GRU recurrences with precomputed input projections.
# ----------------------------------------------------------------------------
def _make_gru_rec_kernel(T, H, emit_hseq):
    """Unidirectional masked-GRU recurrence; gi = x@W_ih + b_ih precomputed outside."""
    def kernel(gi_ref, len_ref, whh_ref, bhh_ref, *out_refs):
        if emit_hseq:
            hseq_ref, hfin_ref = out_refs
        else:
            (hfin_ref,) = out_refs
        N = gi_ref.shape[1]
        whh = whh_ref[...]            # (H, 3H) fused gates, PyTorch order (r, z, n)
        bhh = bhh_ref[...]            # (1, 3H)
        lens = len_ref[...]           # (N, 1) int32

        def step(t, h):
            gi = gi_ref[t]            # (N, 3H) input projection for this time step
            gh = jnp.dot(h.astype(whh.dtype), whh,
                         preferred_element_type=jnp.float32) + bhh
            r = jax.nn.sigmoid(gi[:, 0:H] + gh[:, 0:H])
            z = jax.nn.sigmoid(gi[:, H:2 * H] + gh[:, H:2 * H])
            n = jnp.tanh(gi[:, 2 * H:3 * H] + r * gh[:, 2 * H:3 * H])
            h_new = (1.0 - z) * n + z * h
            h = jnp.where(t < lens, h_new, h)      # packed-sequence masking
            if emit_hseq:
                hseq_ref[t] = h                    # feeds the next stacked layer
            return h

        h0 = jnp.zeros((N, H), jnp.float32)
        h = lax.fori_loop(0, T, step, h0, unroll=True)
        hfin_ref[...] = h                          # written once, at the end
    return kernel


def _make_bigru_rec_kernel(T, H):
    """Fused forward+backward masked-GRU recurrence.

    Carried state h is (N, 2H) laid out [h_bwd | h_fwd]; the recurrent weight is a
    block-diagonal (2H, 6H) matrix so both directions share ONE MXU dot per step.
    gi_b_ref is the backward input projection with its time axis flipped, so the
    in-kernel loop runs forward in t for both directions.
    Only the final hidden states are emitted, already in the
    torch.cat((hidden[-1], hidden[-2]), 1) = [bwd | fwd] layout.
    """
    def kernel(gi_f_ref, gi_b_ref, len_ref, whh_ref, bhh_ref, hfin_ref):
        whh = whh_ref[...]            # (2H, 6H) = blockdiag(W_hh_bwd, W_hh_fwd)
        bhh = bhh_ref[...]            # (1, 6H)  = [b_hh_bwd | b_hh_fwd]
        lens = len_ref[...]           # (N, 1)

        def cell(gi, gh, h_old):
            r = jax.nn.sigmoid(gi[:, 0:H] + gh[:, 0:H])
            z = jax.nn.sigmoid(gi[:, H:2 * H] + gh[:, H:2 * H])
            n = jnp.tanh(gi[:, 2 * H:3 * H] + r * gh[:, 2 * H:3 * H])
            return (1.0 - z) * n + z * h_old

        def step(t, h):
            gh = jnp.dot(h.astype(whh.dtype), whh,
                         preferred_element_type=jnp.float32) + bhh   # (N, 6H)
            h_b, h_f = h[:, 0:H], h[:, H:2 * H]
            hb_new = cell(gi_b_ref[t], gh[:, 0:3 * H], h_b)
            hf_new = cell(gi_f_ref[t], gh[:, 3 * H:6 * H], h_f)
            hb = jnp.where((T - 1 - t) < lens, hb_new, h_b)  # bwd walks T-1 .. 0
            hf = jnp.where(t < lens, hf_new, h_f)
            return jnp.concatenate([hb, hf], axis=1)

        h0 = jnp.zeros((gi_f_ref.shape[1], 2 * H), jnp.float32)
        h = lax.fori_loop(0, T, step, h0, unroll=True)
        hfin_ref[...] = h             # (N, 2H) = [h_bwd_final | h_fwd_final]
    return kernel


# ----------------------------------------------------------------------------
# pallas_call wrappers
# ----------------------------------------------------------------------------
def gru_recurrence(gi, lengths, whh, bhh, *, emit_hseq):
    """Masked GRU recurrence on precomputed input projections.

    gi: (T, N, 3H) f32 time-major; lengths: (N,); whh: (H, 3H); bhh: (1, 3H).
    Returns (hseq (T,N,H) or None, hfin (N,H)).
    """
    T, N, threeH = gi.shape
    H = whh.shape[0]
    assert threeH == 3 * H
    Np = _round_up(N, 8)                          # sublane alignment
    gi_p = _pad_axis(gi.astype(jnp.float32), Np, 1)
    len_p = _pad_axis(lengths.reshape(N, 1).astype(jnp.int32), Np, 0)
    # TODO(synk): for very long sequences, time-chunk the grid (Tb-step blocks with a
    # VMEM-carried hidden state) instead of grid=(1,) with the whole gi resident.

    full2 = lambda i: (0, 0)
    full3 = lambda i: (0, 0, 0)
    in_specs = [
        pl.BlockSpec((T, Np, 3 * H), full3),      # gi (whole tensor, VMEM-resident)
        pl.BlockSpec((Np, 1), full2),             # lengths
        pl.BlockSpec((H, 3 * H), full2),          # W_hh fused
        pl.BlockSpec((1, 3 * H), full2),          # b_hh fused
    ]
    if emit_hseq:
        out_shape = (jax.ShapeDtypeStruct((T, Np, H), jnp.float32),
                     jax.ShapeDtypeStruct((Np, H), jnp.float32))
        out_specs = (pl.BlockSpec((T, Np, H), full3),
                     pl.BlockSpec((Np, H), full2))
    else:
        out_shape = jax.ShapeDtypeStruct((Np, H), jnp.float32)
        out_specs = pl.BlockSpec((Np, H), full2)

    outs = pl.pallas_call(
        _make_gru_rec_kernel(T, H, emit_hseq),
        out_shape=out_shape,
        grid_spec=pltpu.PrefetchScalarGridSpec(
            num_scalar_prefetch=0,
            grid=(1,),
            in_specs=in_specs,
            out_specs=out_specs,
        ),
        compiler_params=pltpu.CompilerParams(dimension_semantics=("arbitrary",)),
    )(gi_p, len_p, whh, bhh)

    if emit_hseq:
        hseq, hfin = outs
        return hseq[:, :N], hfin[:N]
    return None, outs[:N]


def bigru_final(gi_fwd, gi_bwd, lengths, whh_fwd, bhh_fwd, whh_bwd, bhh_bwd):
    """Fused bidirectional GRU; returns only the final hiddens as (N, 2H) = [bwd | fwd].

    gi_fwd / gi_bwd: (T, N, 3H) per-direction input projections (gi_bwd NOT flipped).
    """
    T, N, threeH = gi_fwd.shape
    H = whh_fwd.shape[0]
    assert threeH == 3 * H
    Np = _round_up(N, 8)

    gi_f = _pad_axis(gi_fwd.astype(jnp.float32), Np, 1)
    gi_b = _pad_axis(jnp.flip(gi_bwd.astype(jnp.float32), axis=0), Np, 1)  # time-flip
    len_p = _pad_axis(lengths.reshape(N, 1).astype(jnp.int32), Np, 0)

    zeros = jnp.zeros((H, 3 * H), whh_fwd.dtype)
    whh_blk = jnp.concatenate([
        jnp.concatenate([whh_bwd, zeros], axis=1),   # rows driven by h_bwd
        jnp.concatenate([zeros, whh_fwd], axis=1),   # rows driven by h_fwd
    ], axis=0)                                       # (2H, 6H)
    bhh_cat = jnp.concatenate([bhh_bwd, bhh_fwd], axis=1)   # (1, 6H)

    full2 = lambda i: (0, 0)
    full3 = lambda i: (0, 0, 0)
    hfin = pl.pallas_call(
        _make_bigru_rec_kernel(T, H),
        out_shape=jax.ShapeDtypeStruct((Np, 2 * H), jnp.float32),
        grid_spec=pltpu.PrefetchScalarGridSpec(
            num_scalar_prefetch=0,
            grid=(1,),
            in_specs=[
                pl.BlockSpec((T, Np, 3 * H), full3),     # gi forward
                pl.BlockSpec((T, Np, 3 * H), full3),     # gi backward (time-flipped)
                pl.BlockSpec((Np, 1), full2),            # lengths
                pl.BlockSpec((2 * H, 6 * H), full2),     # block-diag W_hh
                pl.BlockSpec((1, 6 * H), full2),         # fused b_hh
            ],
            out_specs=pl.BlockSpec((Np, 2 * H), full2),
        ),
        compiler_params=pltpu.CompilerParams(dimension_semantics=("arbitrary",)),
    )(gi_f, gi_b, len_p, whh_blk, bhh_cat)
    return hfin[:N]


# ----------------------------------------------------------------------------
# Parameter init (deterministic, PyTorch-GRU-style uniform init, fused layout).
# ----------------------------------------------------------------------------
def init_gru_params(key, input_size, hidden_size):
    ks = jax.random.split(key, 4)
    s = 1.0 / np.sqrt(hidden_size)
    u = lambda k, shape: jax.random.uniform(k, shape, jnp.float32, -s, s)
    return dict(
        wih=u(ks[0], (input_size, 3 * hidden_size)),     # fused (r, z, n) on lanes
        whh=u(ks[1], (hidden_size, 3 * hidden_size)),
        bih=u(ks[2], (1, 3 * hidden_size)),
        bhh=u(ks[3], (1, 3 * hidden_size)),
    )


def init_hrnn_params(key, vocab, emb_size, utt_hidden, dlg_hidden, num_layers):
    keys = jax.random.split(key, 3 + num_layers)
    params = dict(
        embedding=(jax.random.normal(keys[0], (vocab, emb_size), jnp.float32) * 0.1),
        utt_fwd=init_gru_params(keys[1], emb_size, utt_hidden),
        utt_bwd=init_gru_params(keys[2], emb_size, utt_hidden),
        dialog=[],
    )
    in_size = 2 * utt_hidden
    for l in range(num_layers):
        params['dialog'].append(init_gru_params(keys[3 + l], in_size, dlg_hidden))
        in_size = dlg_hidden
    return params


# ----------------------------------------------------------------------------
# HRNN forward: hoisted projections (XLA GEMM) + Pallas recurrence kernels.
# ----------------------------------------------------------------------------
def hrnn_forward(params, context, utterance_lengths, dialog_lengths, pad_token_idx=0):
    """context: (B, Lc, Lu) int32; utterance_lengths: (B, Lc); dialog_lengths: (B,).
    Returns (B, dialog_hidden)."""
    B, Lc, Lu = context.shape
    emb = params['embedding']
    E = emb.shape[1]
    Hu = params['utt_fwd']['whh'].shape[0]
    N = B * Lc

    # Transpose the small int32 token matrix BEFORE the f32 embedding gather.
    tokens_tm = context.reshape(N, Lu).T                      # (Lu, N)
    x = jnp.take(emb, tokens_tm, axis=0)                      # (Lu, N, E) time-major
    ulen = utterance_lengths.reshape(-1).astype(jnp.int32)

    # Hoisted input projections: one (Lu*N, E) x (E, 6Hu) GEMM covers both directions.
    pf, pb = params['utt_fwd'], params['utt_bwd']
    wih_cat = jnp.concatenate([pf['wih'], pb['wih']], axis=1)  # (E, 6Hu)
    bih_cat = jnp.concatenate([pf['bih'], pb['bih']], axis=1)  # (1, 6Hu)
    gi_all = (x.reshape(Lu * N, E) @ wih_cat + bih_cat).reshape(Lu, N, 6 * Hu)
    gi_fwd, gi_bwd = gi_all[..., :3 * Hu], gi_all[..., 3 * Hu:]

    # Fused bidirectional recurrence -> (N, 2Hu) laid out [h_bwd | h_fwd], which is
    # exactly torch.cat((hidden[-1], hidden[-2]), 1).
    utt_enc = bigru_final(gi_fwd, gi_bwd, ulen,
                          pf['whh'], pf['bhh'], pb['whh'], pb['bhh'])
    # Zero-length utterances are filled with pad_token_idx, mirroring the module.
    # NOTE: if pad_token_idx != 0 this injects the raw token index as a hidden value
    # (that is what the PyTorch code does with new_full(..., self.pad_token_idx)).
    utt_enc = jnp.where((ulen > 0)[:, None], utt_enc, jnp.float32(pad_token_idx))

    # Dialog encoder: stacked unidirectional GRU; each layer's input projection is
    # hoisted into one GEMM over all time steps; only the last layer skips hseq.
    seq = utt_enc.reshape(B, Lc, 2 * Hu).transpose(1, 0, 2)   # (Lc, B, 2Hu) time-major
    dlen = dialog_lengths.astype(jnp.int32)
    n_layers = len(params['dialog'])
    hfin = None
    for l, lp in enumerate(params['dialog']):
        T_, Nd, Fin = seq.shape
        Hd = lp['whh'].shape[0]
        gi = (seq.reshape(T_ * Nd, Fin) @ lp['wih'] + lp['bih']).reshape(T_, Nd, 3 * Hd)
        emit_hseq = l < n_layers - 1          # last layer only needs the final hidden
        hseq, hfin = gru_recurrence(gi, dlen, lp['whh'], lp['bhh'], emit_hseq=emit_hseq)
        if emit_hseq:
            seq = hseq
    return hfin                                               # (B, Hd)


# ----------------------------------------------------------------------------
# Pure-JAX reference (for correctness check).
# ----------------------------------------------------------------------------
def _gru_ref(x, lengths, p, reverse=False):
    T, N, F = x.shape
    H = p['whh'].shape[0]
    h = jnp.zeros((N, H), jnp.float32)
    outs = [None] * T
    order = range(T - 1, -1, -1) if reverse else range(T)
    for t in order:
        gi = x[t] @ p['wih'] + p['bih']
        gh = h @ p['whh'] + p['bhh']
        r = jax.nn.sigmoid(gi[:, :H] + gh[:, :H])
        z = jax.nn.sigmoid(gi[:, H:2 * H] + gh[:, H:2 * H])
        n = jnp.tanh(gi[:, 2 * H:] + r * gh[:, 2 * H:])
        h_new = (1.0 - z) * n + z * h
        h = jnp.where((t < lengths)[:, None], h_new, h)
        outs[t] = h
    return jnp.stack(outs, 0), h


def hrnn_forward_ref(params, context, utterance_lengths, dialog_lengths, pad_token_idx=0):
    B, Lc, Lu = context.shape
    Hu = params['utt_fwd']['whh'].shape[0]
    tokens = context.reshape(B * Lc, Lu)
    x = jnp.take(params['embedding'], tokens, axis=0).transpose(1, 0, 2)
    ulen = utterance_lengths.reshape(-1).astype(jnp.int32)
    _, h_fwd = _gru_ref(x, ulen, params['utt_fwd'], reverse=False)
    _, h_bwd = _gru_ref(x, ulen, params['utt_bwd'], reverse=True)
    utt_enc = jnp.concatenate([h_bwd, h_fwd], axis=1)
    utt_enc = jnp.where((ulen > 0)[:, None], utt_enc, jnp.float32(pad_token_idx))
    seq = utt_enc.reshape(B, Lc, 2 * Hu).transpose(1, 0, 2)
    dlen = dialog_lengths.astype(jnp.int32)
    hfin = None
    for lp in params['dialog']:
        seq, hfin = _gru_ref(seq, dlen, lp, reverse=False)
    return hfin


# ----------------------------------------------------------------------------
if __name__ == "__main__":
    B, Lc, Lu = 2, 3, 8           # batch, max conversation length, max utterance length
    V, E = 50, 32                 # vocab, embedding size
    Hu, Hd, n_layers = 16, 32, 2  # utterance hidden, dialog hidden, dialog GRU layers
    pad_idx = 0

    key = jax.random.PRNGKey(0)
    kp, kc = jax.random.split(key, 2)
    params = init_hrnn_params(kp, V, E, Hu, Hd, n_layers)

    context = jax.random.randint(kc, (B, Lc, Lu), 1, V, dtype=jnp.int32)
    utterance_lengths = jnp.array([[5, 3, 0], [8, 1, 4]], dtype=jnp.int32)
    dialog_lengths = jnp.array([2, 3], dtype=jnp.int32)
    # zero (pad) tokens beyond each utterance length, like a real padded batch
    tpos = jnp.arange(Lu)[None, None, :]
    context = jnp.where(tpos < utterance_lengths[..., None], context, pad_idx)

    out = hrnn_forward(params, context, utterance_lengths, dialog_lengths, pad_idx)
    out = jax.block_until_ready(out)

    ref = hrnn_forward_ref(params, context, utterance_lengths, dialog_lengths, pad_idx)
    assert out.shape == (B, Hd)
    np.testing.assert_allclose(np.asarray(out), np.asarray(ref), rtol=2e-2, atol=2e-2)

    # TODO(synk): dropout path (use_dropout=True) not implemented; module default is False.
    print("KERNEL_OK")
</pallas_src>

<mosaic_0001>
module attributes {stable_mosaic.version = 11 : i64} {
  func.func @kernel(%arg0: i32, %arg1: memref<8x8x48xf32, #tpu.memory_space<vmem>>, %arg2: memref<8x8x48xf32, #tpu.memory_space<vmem>>, %arg3: memref<8x1xi32, #tpu.memory_space<vmem>>, %arg4: memref<32x96xf32, #tpu.memory_space<vmem>>, %arg5: memref<1x96xf32, #tpu.memory_space<vmem>>, %arg6: memref<8x32xf32, #tpu.memory_space<vmem>>) attributes {dimension_semantics = [#tpu.dimension_semantics<arbitrary>], iteration_bounds = array<i64: 1>, scalar_prefetch = 0 : i64, scratch_operands = 0 : i64, tpu.core_type = #tpu.core_type<tc>, window_params = [{pipeline_mode = #tpu.pipeline_mode<synchronous>, transform_indices = @transform_0, window_bounds = array<i64: 8, 8, 48>}, {pipeline_mode = #tpu.pipeline_mode<synchronous>, transform_indices = @transform_1, window_bounds = array<i64: 8, 8, 48>}, {pipeline_mode = #tpu.pipeline_mode<synchronous>, transform_indices = @transform_2, window_bounds = array<i64: 8, 1>}, {pipeline_mode = #tpu.pipeline_mode<synchronous>, transform_indices = @transform_3, window_bounds = array<i64: 32, 96>}, {pipeline_mode = #tpu.pipeline_mode<synchronous>, transform_indices = @transform_4, window_bounds = array<i64: 1, 96>}, {pipeline_mode = #tpu.pipeline_mode<synchronous>, transform_indices = @transform_5, window_bounds = array<i64: 8, 32>}]} {
    %c0 = arith.constant 0 : index
    %c0_0 = arith.constant 0 : index
    %0 = vector.load %arg4[%c0, %c0_0] : memref<32x96xf32, #tpu.memory_space<vmem>>, vector<32x96xf32>
    %c0_1 = arith.constant 0 : index
    %c0_2 = arith.constant 0 : index
    %1 = vector.load %arg5[%c0_1, %c0_2] : memref<1x96xf32, #tpu.memory_space<vmem>>, vector<1x96xf32>
    %c0_3 = arith.constant 0 : index
    %c0_4 = arith.constant 0 : index
    %2 = vector.load %arg3[%c0_3, %c0_4] : memref<8x1xi32, #tpu.memory_space<vmem>>, vector<8x1xi32>
    %cst = arith.constant 0.000000e+00 : f32
    %3 = vector.broadcast %cst : f32 to vector<8x32xf32>
    %c0_i32 = arith.constant 0 : i32
    %cst_5 = arith.constant dense<0.000000e+00> : vector<8x96xf32>
    %4 = tpu.matmul %3, %0, %cst_5 {dimension_numbers = #tpu.dot_dimension_numbers<[1], [0], [0], [1], [0, 0, 1, 1], [], []>} : vector<8x32xf32>, vector<32x96xf32>, vector<8x96xf32> -> vector<8x96xf32>
    %5 = vector.broadcast %1 : vector<1x96xf32> to vector<8x96xf32>
    %6 = arith.addf %4, %5 : vector<8x96xf32>
    %7 = vector.extract_strided_slice %3 {offsets = [0, 0], sizes = [8, 16], strides = [1, 1]} : vector<8x32xf32> to vector<8x16xf32>
    %8 = vector.extract_strided_slice %3 {offsets = [0, 16], sizes = [8, 16], strides = [1, 1]} : vector<8x32xf32> to vector<8x16xf32>
    %9 = arith.index_cast %c0_i32 : i32 to index
    %c0_6 = arith.constant 0 : index
    %c0_7 = arith.constant 0 : index
    %10 = vector.load %arg2[%9, %c0_6, %c0_7] : memref<8x8x48xf32, #tpu.memory_space<vmem>>, vector<1x8x48xf32>
    %11 = vector.shape_cast %10 : vector<1x8x48xf32> to vector<8x48xf32>
    %12 = vector.extract_strided_slice %6 {offsets = [0, 0], sizes = [8, 48], strides = [1, 1]} : vector<8x96xf32> to vector<8x48xf32>
    %13 = vector.extract_strided_slice %11 {offsets = [0, 0], sizes = [8, 16], strides = [1, 1]} : vector<8x48xf32> to vector<8x16xf32>
    %14 = vector.extract_strided_slice %12 {offsets = [0, 0], sizes = [8, 16], strides = [1, 1]} : vector<8x48xf32> to vector<8x16xf32>
    %15 = arith.addf %13, %14 : vector<8x16xf32>
    %16 = arith.negf %15 : vector<8x16xf32>
    %17 = math.exp %16 : vector<8x16xf32>
    %cst_8 = arith.constant 1.000000e+00 : f32
    %18 = vector.broadcast %cst_8 : f32 to vector<8x16xf32>
    %19 = arith.addf %18, %17 : vector<8x16xf32>
    %20 = arith.divf %18, %19 : vector<8x16xf32>
    %21 = vector.extract_strided_slice %11 {offsets = [0, 16], sizes = [8, 16], strides = [1, 1]} : vector<8x48xf32> to vector<8x16xf32>
    %22 = vector.extract_strided_slice %12 {offsets = [0, 16], sizes = [8, 16], strides = [1, 1]} : vector<8x48xf32> to vector<8x16xf32>
    %23 = arith.addf %21, %22 : vector<8x16xf32>
    %24 = arith.negf %23 : vector<8x16xf32>
    %25 = math.exp %24 : vector<8x16xf32>
    %cst_9 = arith.constant 1.000000e+00 : f32
    %26 = vector.broadcast %cst_9 : f32 to vector<8x16xf32>
    %27 = arith.addf %26, %25 : vector<8x16xf32>
    %28 = arith.divf %26, %27 : vector<8x16xf32>
    %29 = vector.extract_strided_slice %11 {offsets = [0, 32], sizes = [8, 16], strides = [1, 1]} : vector<8x48xf32> to vector<8x16xf32>
    %30 = vector.extract_strided_slice %12 {offsets = [0, 32], sizes = [8, 16], strides = [1, 1]} : vector<8x48xf32> to vector<8x16xf32>
    %31 = arith.mulf %20, %30 : vector<8x16xf32>
    %32 = arith.addf %29, %31 : vector<8x16xf32>
    %33 = math.tanh %32 : vector<8x16xf32>
    %cst_10 = arith.constant 1.000000e+00 : f32
    %34 = vector.broadcast %cst_10 : f32 to vector<8x16xf32>
    %35 = arith.subf %34, %28 : vector<8x16xf32>
    %36 = arith.mulf %35, %33 : vector<8x16xf32>
    %37 = arith.mulf %28, %7 : vector<8x16xf32>
    %38 = arith.addf %36, %37 : vector<8x16xf32>
    %39 = arith.index_cast %c0_i32 : i32 to index
    %c0_11 = arith.constant 0 : index
    %c0_12 = arith.constant 0 : index
    %40 = vector.load %arg1[%39, %c0_11, %c0_12] : memref<8x8x48xf32, #tpu.memory_space<vmem>>, vector<1x8x48xf32>
    %41 = vector.shape_cast %40 : vector<1x8x48xf32> to vector<8x48xf32>
    %42 = vector.extract_strided_slice %6 {offsets = [0, 48], sizes = [8, 48], strides = [1, 1]} : vector<8x96xf32> to vector<8x48xf32>
    %43 = vector.extract_strided_slice %41 {offsets = [0, 0], sizes = [8, 16], strides = [1, 1]} : vector<8x48xf32> to vector<8x16xf32>
    %44 = vector.extract_strided_slice %42 {offsets = [0, 0], sizes = [8, 16], strides = [1, 1]} : vector<8x48xf32> to vector<8x16xf32>
    %45 = arith.addf %43, %44 : vector<8x16xf32>
    %46 = arith.negf %45 : vector<8x16xf32>
    %47 = math.exp %46 : vector<8x16xf32>
    %cst_13 = arith.constant 1.000000e+00 : f32
    %48 = vector.broadcast %cst_13 : f32 to vector<8x16xf32>
    %49 = arith.addf %48, %47 : vector<8x16xf32>
    %50 = arith.divf %48, %49 : vector<8x16xf32>
    %51 = vector.extract_strided_slice %41 {offsets = [0, 16], sizes = [8, 16], strides = [1, 1]} : vector<8x48xf32> to vector<8x16xf32>
    %52 = vector.extract_strided_slice %42 {offsets = [0, 16], sizes = [8, 16], strides = [1, 1]} : vector<8x48xf32> to vector<8x16xf32>
    %53 = arith.addf %51, %52 : vector<8x16xf32>
    %54 = arith.negf %53 : vector<8x16xf32>
    %55 = math.exp %54 : vector<8x16xf32>
    %cst_14 = arith.constant 1.000000e+00 : f32
    %56 = vector.broadcast %cst_14 : f32 to vector<8x16xf32>
    %57 = arith.addf %56, %55 : vector<8x16xf32>
    %58 = arith.divf %56, %57 : vector<8x16xf32>
    %59 = vector.extract_strided_slice %41 {offsets = [0, 32], sizes = [8, 16], strides = [1, 1]} : vector<8x48xf32> to vector<8x16xf32>
    %60 = vector.extract_strided_slice %42 {offsets = [0, 32], sizes = [8, 16], strides = [1, 1]} : vector<8x48xf32> to vector<8x16xf32>
    %61 = arith.mulf %50, %60 : vector<8x16xf32>
    %62 = arith.addf %59, %61 : vector<8x16xf32>
    %63 = math.tanh %62 : vector<8x16xf32>
    %cst_15 = arith.constant 1.000000e+00 : f32
    %64 = vector.broadcast %cst_15 : f32 to vector<8x16xf32>
    %65 = arith.subf %64, %58 : vector<8x16xf32>
    %66 = arith.mulf %65, %63 : vector<8x16xf32>
    %67 = arith.mulf %58, %8 : vector<8x16xf32>
    %68 = arith.addf %66, %67 : vector<8x16xf32>
    %c7_i32 = arith.constant 7 : i32
    %69 = arith.subi %c7_i32, %c0_i32 : i32
    %70 = vector.broadcast %69 : i32 to vector<8x1xi32>
    %71 = arith.cmpi slt, %70, %2 : vector<8x1xi32>
    %72 = vector.shape_cast %71 : vector<8x1xi1> to vector<8x1xi1>
    %73 = vector.broadcast %72 : vector<8x1xi1> to vector<8x16xi1>
    %74 = arith.select %73, %38, %7 : vector<8x16xi1>, vector<8x16xf32>
    %75 = vector.broadcast %c0_i32 : i32 to vector<8x1xi32>
    %76 = arith.cmpi slt, %75, %2 : vector<8x1xi32>
    %77 = vector.shape_cast %76 : vector<8x1xi1> to vector<8x1xi1>
    %78 = vector.broadcast %77 : vector<8x1xi1> to vector<8x16xi1>
    %79 = arith.select %78, %68, %8 : vector<8x16xi1>, vector<8x16xf32>
    %80 = tpu.concatenate %74, %79 in 1 : vector<8x16xf32>, vector<8x16xf32> -> vector<8x32xf32>
    %c1_i32 = arith.constant 1 : i32
    %cst_16 = arith.constant dense<0.000000e+00> : vector<8x96xf32>
    %81 = tpu.matmul %80, %0, %cst_16 {dimension_numbers = #tpu.dot_dimension_numbers<[1], [0], [0], [1], [0, 0, 1, 1], [], []>} : vector<8x32xf32>, vector<32x96xf32>, vector<8x96xf32> -> vector<8x96xf32>
    %82 = vector.broadcast %1 : vector<1x96xf32> to vector<8x96xf32>
    %83 = arith.addf %81, %82 : vector<8x96xf32>
    %84 = vector.extract_strided_slice %80 {offsets = [0, 0], sizes = [8, 16], strides = [1, 1]} : vector<8x32xf32> to vector<8x16xf32>
    %85 = vector.extract_strided_slice %80 {offsets = [0, 16], sizes = [8, 16], strides = [1, 1]} : vector<8x32xf32> to vector<8x16xf32>
    %86 = arith.index_cast %c1_i32 : i32 to index
    %c0_17 = arith.constant 0 : index
    %c0_18 = arith.constant 0 : index
    %87 = vector.load %arg2[%86, %c0_17, %c0_18] : memref<8x8x48xf32, #tpu.memory_space<vmem>>, vector<1x8x48xf32>
    %88 = vector.shape_cast %87 : vector<1x8x48xf32> to vector<8x48xf32>
    %89 = vector.extract_strided_slice %83 {offsets = [0, 0], sizes = [8, 48], strides = [1, 1]} : vector<8x96xf32> to vector<8x48xf32>
    %90 = vector.extract_strided_slice %88 {offsets = [0, 0], sizes = [8, 16], strides = [1, 1]} : vector<8x48xf32> to vector<8x16xf32>
    %91 = vector.extract_strided_slice %89 {offsets = [0, 0], sizes = [8, 16], strides = [1, 1]} : vector<8x48xf32> to vector<8x16xf32>
    %92 = arith.addf %90, %91 : vector<8x16xf32>
    %93 = arith.negf %92 : vector<8x16xf32>
    %94 = math.exp %93 : vector<8x16xf32>
    %cst_19 = arith.constant 1.000000e+00 : f32
    %95 = vector.broadcast %cst_19 : f32 to vector<8x16xf32>
    %96 = arith.addf %95, %94 : vector<8x16xf32>
    %97 = arith.divf %95, %96 : vector<8x16xf32>
    %98 = vector.extract_strided_slice %88 {offsets = [0, 16], sizes = [8, 16], strides = [1, 1]} : vector<8x48xf32> to vector<8x16xf32>
    %99 = vector.extract_strided_slice %89 {offsets = [0, 16], sizes = [8, 16], strides = [1, 1]} : vector<8x48xf32> to vector<8x16xf32>
    %100 = arith.addf %98, %99 : vector<8x16xf32>
    %101 = arith.negf %100 : vector<8x16xf32>
    %102 = math.exp %101 : vector<8x16xf32>
    %cst_20 = arith.constant 1.000000e+00 : f32
    %103 = vector.broadcast %cst_20 : f32 to vector<8x16xf32>
    %104 = arith.addf %103, %102 : vector<8x16xf32>
    %105 = arith.divf %103, %104 : vector<8x16xf32>
    %106 = vector.extract_strided_slice %88 {offsets = [0, 32], sizes = [8, 16], strides = [1, 1]} : vector<8x48xf32> to vector<8x16xf32>
    %107 = vector.extract_strided_slice %89 {offsets = [0, 32], sizes = [8, 16], strides = [1, 1]} : vector<8x48xf32> to vector<8x16xf32>
    %108 = arith.mulf %97, %107 : vector<8x16xf32>
    %109 = arith.addf %106, %108 : vector<8x16xf32>
    %110 = math.tanh %109 : vector<8x16xf32>
    %cst_21 = arith.constant 1.000000e+00 : f32
    %111 = vector.broadcast %cst_21 : f32 to vector<8x16xf32>
    %112 = arith.subf %111, %105 : vector<8x16xf32>
    %113 = arith.mulf %112, %110 : vector<8x16xf32>
    %114 = arith.mulf %105, %84 : vector<8x16xf32>
    %115 = arith.addf %113, %114 : vector<8x16xf32>
    %116 = arith.index_cast %c1_i32 : i32 to index
    %c0_22 = arith.constant 0 : index
    %c0_23 = arith.constant 0 : index
    %117 = vector.load %arg1[%116, %c0_22, %c0_23] : memref<8x8x48xf32, #tpu.memory_space<vmem>>, vector<1x8x48xf32>
    %118 = vector.shape_cast %117 : vector<1x8x48xf32> to vector<8x48xf32>
    %119 = vector.extract_strided_slice %83 {offsets = [0, 48], sizes = [8, 48], strides = [1, 1]} : vector<8x96xf32> to vector<8x48xf32>
    %120 = vector.extract_strided_slice %118 {offsets = [0, 0], sizes = [8, 16], strides = [1, 1]} : vector<8x48xf32> to vector<8x16xf32>
    %121 = vector.extract_strided_slice %119 {offsets = [0, 0], sizes = [8, 16], strides = [1, 1]} : vector<8x48xf32> to vector<8x16xf32>
    %122 = arith.addf %120, %121 : vector<8x16xf32>
    %123 = arith.negf %122 : vector<8x16xf32>
    %124 = math.exp %123 : vector<8x16xf32>
    %cst_24 = arith.constant 1.000000e+00 : f32
    %125 = vector.broadcast %cst_24 : f32 to vector<8x16xf32>
    %126 = arith.addf %125, %124 : vector<8x16xf32>
    %127 = arith.divf %125, %126 : vector<8x16xf32>
    %128 = vector.extract_strided_slice %118 {offsets = [0, 16], sizes = [8, 16], strides = [1, 1]} : vector<8x48xf32> to vector<8x16xf32>
    %129 = vector.extract_strided_slice %119 {offsets = [0, 16], sizes = [8, 16], strides = [1, 1]} : vector<8x48xf32> to vector<8x16xf32>
    %130 = arith.addf %128, %129 : vector<8x16xf32>
    %131 = arith.negf %130 : vector<8x16xf32>
    %132 = math.exp %131 : vector<8x16xf32>
    %cst_25 = arith.constant 1.000000e+00 : f32
    %133 = vector.broadcast %cst_25 : f32 to vector<8x16xf32>
    %134 = arith.addf %133, %132 : vector<8x16xf32>
    %135 = arith.divf %133, %134 : vector<8x16xf32>
    %136 = vector.extract_strided_slice %118 {offsets = [0, 32], sizes = [8, 16], strides = [1, 1]} : vector<8x48xf32> to vector<8x16xf32>
    %137 = vector.extract_strided_slice %119 {offsets = [0, 32], sizes = [8, 16], strides = [1, 1]} : vector<8x48xf32> to vector<8x16xf32>
    %138 = arith.mulf %127, %137 : vector<8x16xf32>
    %139 = arith.addf %136, %138 : vector<8x16xf32>
    %140 = math.tanh %139 : vector<8x16xf32>
    %cst_26 = arith.constant 1.000000e+00 : f32
    %141 = vector.broadcast %cst_26 : f32 to vector<8x16xf32>
    %142 = arith.subf %141, %135 : vector<8x16xf32>
    %143 = arith.mulf %142, %140 : vector<8x16xf32>
    %144 = arith.mulf %135, %85 : vector<8x16xf32>
    %145 = arith.addf %143, %144 : vector<8x16xf32>
    %c7_i32_27 = arith.constant 7 : i32
    %146 = arith.subi %c7_i32_27, %c1_i32 : i32
    %147 = vector.broadcast %146 : i32 to vector<8x1xi32>
    %148 = arith.cmpi slt, %147, %2 : vector<8x1xi32>
    %149 = vector.shape_cast %148 : vector<8x1xi1> to vector<8x1xi1>
    %150 = vector.broadcast %149 : vector<8x1xi1> to vector<8x16xi1>
    %151 = arith.select %150, %115, %84 : vector<8x16xi1>, vector<8x16xf32>
    %152 = vector.broadcast %c1_i32 : i32 to vector<8x1xi32>
    %153 = arith.cmpi slt, %152, %2 : vector<8x1xi32>
    %154 = vector.shape_cast %153 : vector<8x1xi1> to vector<8x1xi1>
    %155 = vector.broadcast %154 : vector<8x1xi1> to vector<8x16xi1>
    %156 = arith.select %155, %145, %85 : vector<8x16xi1>, vector<8x16xf32>
    %157 = tpu.concatenate %151, %156 in 1 : vector<8x16xf32>, vector<8x16xf32> -> vector<8x32xf32>
    %c2_i32 = arith.constant 2 : i32
    %cst_28 = arith.constant dense<0.000000e+00> : vector<8x96xf32>
    %158 = tpu.matmul %157, %0, %cst_28 {dimension_numbers = #tpu.dot_dimension_numbers<[1], [0], [0], [1], [0, 0, 1, 1], [], []>} : vector<8x32xf32>, vector<32x96xf32>, vector<8x96xf32> -> vector<8x96xf32>
    %159 = vector.broadcast %1 : vector<1x96xf32> to vector<8x96xf32>
    %160 = arith.addf %158, %159 : vector<8x96xf32>
    %161 = vector.extract_strided_slice %157 {offsets = [0, 0], sizes = [8, 16], strides = [1, 1]} : vector<8x32xf32> to vector<8x16xf32>
    %162 = vector.extract_strided_slice %157 {offsets = [0, 16], sizes = [8, 16], strides = [1, 1]} : vector<8x32xf32> to vector<8x16xf32>
    %163 = arith.index_cast %c2_i32 : i32 to index
    %c0_29 = arith.constant 0 : index
    %c0_30 = arith.constant 0 : index
    %164 = vector.load %arg2[%163, %c0_29, %c0_30] : memref<8x8x48xf32, #tpu.memory_space<vmem>>, vector<1x8x48xf32>
    %165 = vector.shape_cast %164 : vector<1x8x48xf32> to vector<8x48xf32>
    %166 = vector.extract_strided_slice %160 {offsets = [0, 0], sizes = [8, 48], strides = [1, 1]} : vector<8x96xf32> to vector<8x48xf32>
    %167 = vector.extract_strided_slice %165 {offsets = [0, 0], sizes = [8, 16], strides = [1, 1]} : vector<8x48xf32> to vector<8x16xf32>
    %168 = vector.extract_strided_slice %166 {offsets = [0, 0], sizes = [8, 16], strides = [1, 1]} : vector<8x48xf32> to vector<8x16xf32>
    %169 = arith.addf %167, %168 : vector<8x16xf32>
    %170 = arith.negf %169 : vector<8x16xf32>
    %171 = math.exp %170 : vector<8x16xf32>
    %cst_31 = arith.constant 1.000000e+00 : f32
    %172 = vector.broadcast %cst_31 : f32 to vector<8x16xf32>
    %173 = arith.addf %172, %171 : vector<8x16xf32>
    %174 = arith.divf %172, %173 : vector<8x16xf32>
    %175 = vector.extract_strided_slice %165 {offsets = [0, 16], sizes = [8, 16], strides = [1, 1]} : vector<8x48xf32> to vector<8x16xf32>
    %176 = vector.extract_strided_slice %166 {offsets = [0, 16], sizes = [8, 16], strides = [1, 1]} : vector<8x48xf32> to vector<8x16xf32>
    %177 = arith.addf %175, %176 : vector<8x16xf32>
    %178 = arith.negf %177 : vector<8x16xf32>
    %179 = math.exp %178 : vector<8x16xf32>
    %cst_32 = arith.constant 1.000000e+00 : f32
    %180 = vector.broadcast %cst_32 : f32 to vector<8x16xf32>
    %181 = arith.addf %180, %179 : vector<8x16xf32>
    %182 = arith.divf %180, %181 : vector<8x16xf32>
    %183 = vector.extract_strided_slice %165 {offsets = [0, 32], sizes = [8, 16], strides = [1, 1]} : vector<8x48xf32> to vector<8x16xf32>
    %184 = vector.extract_strided_slice %166 {offsets = [0, 32], sizes = [8, 16], strides = [1, 1]} : vector<8x48xf32> to vector<8x16xf32>
    %185 = arith.mulf %174, %184 : vector<8x16xf32>
    %186 = arith.addf %183, %185 : vector<8x16xf32>
    %187 = math.tanh %186 : vector<8x16xf32>
    %cst_33 = arith.constant 1.000000e+00 : f32
    %188 = vector.broadcast %cst_33 : f32 to vector<8x16xf32>
    %189 = arith.subf %188, %182 : vector<8x16xf32>
    %190 = arith.mulf %189, %187 : vector<8x16xf32>
    %191 = arith.mulf %182, %161 : vector<8x16xf32>
    %192 = arith.addf %190, %191 : vector<8x16xf32>
    %193 = arith.index_cast %c2_i32 : i32 to index
    %c0_34 = arith.constant 0 : index
    %c0_35 = arith.constant 0 : index
    %194 = vector.load %arg1[%193, %c0_34, %c0_35] : memref<8x8x48xf32, #tpu.memory_space<vmem>>, vector<1x8x48xf32>
    %195 = vector.shape_cast %194 : vector<1x8x48xf32> to vector<8x48xf32>
    %196 = vector.extract_strided_slice %160 {offsets = [0, 48], sizes = [8, 48], strides = [1, 1]} : vector<8x96xf32> to vector<8x48xf32>
    %197 = vector.extract_strided_slice %195 {offsets = [0, 0], sizes = [8, 16], strides = [1, 1]} : vector<8x48xf32> to vector<8x16xf32>
    %198 = vector.extract_strided_slice %196 {offsets = [0, 0], sizes = [8, 16], strides = [1, 1]} : vector<8x48xf32> to vector<8x16xf32>
    %199 = arith.addf %197, %198 : vector<8x16xf32>
    %200 = arith.negf %199 : vector<8x16xf32>
    %201 = math.exp %200 : vector<8x16xf32>
    %cst_36 = arith.constant 1.000000e+00 : f32
    %202 = vector.broadcast %cst_36 : f32 to vector<8x16xf32>
    %203 = arith.addf %202, %201 : vector<8x16xf32>
    %204 = arith.divf %202, %203 : vector<8x16xf32>
    %205 = vector.extract_strided_slice %195 {offsets = [0, 16], sizes = [8, 16], strides = [1, 1]} : vector<8x48xf32> to vector<8x16xf32>
    %206 = vector.extract_strided_slice %196 {offsets = [0, 16], sizes = [8, 16], strides = [1, 1]} : vector<8x48xf32> to vector<8x16xf32>
    %207 = arith.addf %205, %206 : vector<8x16xf32>
    %208 = arith.negf %207 : vector<8x16xf32>
    %209 = math.exp %208 : vector<8x16xf32>
    %cst_37 = arith.constant 1.000000e+00 : f32
    %210 = vector.broadcast %cst_37 : f32 to vector<8x16xf32>
    %211 = arith.addf %210, %209 : vector<8x16xf32>
    %212 = arith.divf %210, %211 : vector<8x16xf32>
    %213 = vector.extract_strided_slice %195 {offsets = [0, 32], sizes = [8, 16], strides = [1, 1]} : vector<8x48xf32> to vector<8x16xf32>
    %214 = vector.extract_strided_slice %196 {offsets = [0, 32], sizes = [8, 16], strides = [1, 1]} : vector<8x48xf32> to vector<8x16xf32>
    %215 = arith.mulf %204, %214 : vector<8x16xf32>
    %216 = arith.addf %213, %215 : vector<8x16xf32>
    %217 = math.tanh %216 : vector<8x16xf32>
    %cst_38 = arith.constant 1.000000e+00 : f32
    %218 = vector.broadcast %cst_38 : f32 to vector<8x16xf32>
    %219 = arith.subf %218, %212 : vector<8x16xf32>
    %220 = arith.mulf %219, %217 : vector<8x16xf32>
    %221 = arith.mulf %212, %162 : vector<8x16xf32>
    %222 = arith.addf %220, %221 : vector<8x16xf32>
    %c7_i32_39 = arith.constant 7 : i32
    %223 = arith.subi %c7_i32_39, %c2_i32 : i32
    %224 = vector.broadcast %223 : i32 to vector<8x1xi32>
    %225 = arith.cmpi slt, %224, %2 : vector<8x1xi32>
    %226 = vector.shape_cast %225 : vector<8x1xi1> to vector<8x1xi1>
    %227 = vector.broadcast %226 : vector<8x1xi1> to vector<8x16xi1>
    %228 = arith.select %227, %192, %161 : vector<8x16xi1>, vector<8x16xf32>
    %229 = vector.broadcast %c2_i32 : i32 to vector<8x1xi32>
    %230 = arith.cmpi slt, %229, %2 : vector<8x1xi32>
    %231 = vector.shape_cast %230 : vector<8x1xi1> to vector<8x1xi1>
    %232 = vector.broadcast %231 : vector<8x1xi1> to vector<8x16xi1>
    %233 = arith.select %232, %222, %162 : vector<8x16xi1>, vector<8x16xf32>
    %234 = tpu.concatenate %228, %233 in 1 : vector<8x16xf32>, vector<8x16xf32> -> vector<8x32xf32>
    %c3_i32 = arith.constant 3 : i32
    %cst_40 = arith.constant dense<0.000000e+00> : vector<8x96xf32>
    %235 = tpu.matmul %234, %0, %cst_40 {dimension_numbers = #tpu.dot_dimension_numbers<[1], [0], [0], [1], [0, 0, 1, 1], [], []>} : vector<8x32xf32>, vector<32x96xf32>, vector<8x96xf32> -> vector<8x96xf32>
    %236 = vector.broadcast %1 : vector<1x96xf32> to vector<8x96xf32>
    %237 = arith.addf %235, %236 : vector<8x96xf32>
    %238 = vector.extract_strided_slice %234 {offsets = [0, 0], sizes = [8, 16], strides = [1, 1]} : vector<8x32xf32> to vector<8x16xf32>
    %239 = vector.extract_strided_slice %234 {offsets = [0, 16], sizes = [8, 16], strides = [1, 1]} : vector<8x32xf32> to vector<8x16xf32>
    %240 = arith.index_cast %c3_i32 : i32 to index
    %c0_41 = arith.constant 0 : index
    %c0_42 = arith.constant 0 : index
    %241 = vector.load %arg2[%240, %c0_41, %c0_42] : memref<8x8x48xf32, #tpu.memory_space<vmem>>, vector<1x8x48xf32>
    %242 = vector.shape_cast %241 : vector<1x8x48xf32> to vector<8x48xf32>
    %243 = vector.extract_strided_slice %237 {offsets = [0, 0], sizes = [8, 48], strides = [1, 1]} : vector<8x96xf32> to vector<8x48xf32>
    %244 = vector.extract_strided_slice %242 {offsets = [0, 0], sizes = [8, 16], strides = [1, 1]} : vector<8x48xf32> to vector<8x16xf32>
    %245 = vector.extract_strided_slice %243 {offsets = [0, 0], sizes = [8, 16], strides = [1, 1]} : vector<8x48xf32> to vector<8x16xf32>
    %246 = arith.addf %244, %245 : vector<8x16xf32>
    %247 = arith.negf %246 : vector<8x16xf32>
    %248 = math.exp %247 : vector<8x16xf32>
    %cst_43 = arith.constant 1.000000e+00 : f32
    %249 = vector.broadcast %cst_43 : f32 to vector<8x16xf32>
    %250 = arith.addf %249, %248 : vector<8x16xf32>
    %251 = arith.divf %249, %250 : vector<8x16xf32>
    %252 = vector.extract_strided_slice %242 {offsets = [0, 16], sizes = [8, 16], strides = [1, 1]} : vector<8x48xf32> to vector<8x16xf32>
    %253 = vector.extract_strided_slice %243 {offsets = [0, 16], sizes = [8, 16], strides = [1, 1]} : vector<8x48xf32> to vector<8x16xf32>
    %254 = arith.addf %252, %253 : vector<8x16xf32>
    %255 = arith.negf %254 : vector<8x16xf32>
    %256 = math.exp %255 : vector<8x16xf32>
    %cst_44 = arith.constant 1.000000e+00 : f32
    %257 = vector.broadcast %cst_44 : f32 to vector<8x16xf32>
    %258 = arith.addf %257, %256 : vector<8x16xf32>
    %259 = arith.divf %257, %258 : vector<8x16xf32>
    %260 = vector.extract_strided_slice %242 {offsets = [0, 32], sizes = [8, 16], strides = [1, 1]} : vector<8x48xf32> to vector<8x16xf32>
    %261 = vector.extract_strided_slice %243 {offsets = [0, 32], sizes = [8, 16], strides = [1, 1]} : vector<8x48xf32> to vector<8x16xf32>
    %262 = arith.mulf %251, %261 : vector<8x16xf32>
    %263 = arith.addf %260, %262 : vector<8x16xf32>
    %264 = math.tanh %263 : vector<8x16xf32>
    %cst_45 = arith.constant 1.000000e+00 : f32
    %265 = vector.broadcast %cst_45 : f32 to vector<8x16xf32>
    %266 = arith.subf %265, %259 : vector<8x16xf32>
    %267 = arith.mulf %266, %264 : vector<8x16xf32>
    %268 = arith.mulf %259, %238 : vector<8x16xf32>
    %269 = arith.addf %267, %268 : vector<8x16xf32>
    %270 = arith.index_cast %c3_i32 : i32 to index
    %c0_46 = arith.constant 0 : index
    %c0_47 = arith.constant 0 : index
    %271 = vector.load %arg1[%270, %c0_46, %c0_47] : memref<8x8x48xf32, #tpu.memory_space<vmem>>, vector<1x8x48xf32>
    %272 = vector.shape_cast %271 : vector<1x8x48xf32> to vector<8x48xf32>
    %273 = vector.extract_strided_slice %237 {offsets = [0, 48], sizes = [8, 48], strides = [1, 1]} : vector<8x96xf32> to vector<8x48xf32>
    %274 = vector.extract_strided_slice %272 {offsets = [0, 0], sizes = [8, 16], strides = [1, 1]} : vector<8x48xf32> to vector<8x16xf32>
    %275 = vector.extract_strided_slice %273 {offsets = [0, 0], sizes = [8, 16], strides = [1, 1]} : vector<8x48xf32> to vector<8x16xf32>
    %276 = arith.addf %274, %275 : vector<8x16xf32>
    %277 = arith.negf %276 : vector<8x16xf32>
    %278 = math.exp %277 : vector<8x16xf32>
    %cst_48 = arith.constant 1.000000e+00 : f32
    %279 = vector.broadcast %cst_48 : f32 to vector<8x16xf32>
    %280 = arith.addf %279, %278 : vector<8x16xf32>
    %281 = arith.divf %279, %280 : vector<8x16xf32>
    %282 = vector.extract_strided_slice %272 {offsets = [0, 16], sizes = [8, 16], strides = [1, 1]} : vector<8x48xf32> to vector<8x16xf32>
    %283 = vector.extract_strided_slice %273 {offsets = [0, 16], sizes = [8, 16], strides = [1, 1]} : vector<8x48xf32> to vector<8x16xf32>
    %284 = arith.addf %282, %283 : vector<8x16xf32>
    %285 = arith.negf %284 : vector<8x16xf32>
    %286 = math.exp %285 : vector<8x16xf32>
    %cst_49 = arith.constant 1.000000e+00 : f32
    %287 = vector.broadcast %cst_49 : f32 to vector<8x16xf32>
    %288 = arith.addf %287, %286 : vector<8x16xf32>
    %289 = arith.divf %287, %288 : vector<8x16xf32>
    %290 = vector.extract_strided_slice %272 {offsets = [0, 32], sizes = [8, 16], strides = [1, 1]} : vector<8x48xf32> to vector<8x16xf32>
    %291 = vector.extract_strided_slice %273 {offsets = [0, 32], sizes = [8, 16], strides = [1, 1]} : vector<8x48xf32> to vector<8x16xf32>
    %292 = arith.mulf %281, %291 : vector<8x16xf32>
    %293 = arith.addf %290, %292 : vector<8x16xf32>
    %294 = math.tanh %293 : vector<8x16xf32>
    %cst_50 = arith.constant 1.000000e+00 : f32
    %295 = vector.broadcast %cst_50 : f32 to vector<8x16xf32>
    %296 = arith.subf %295, %289 : vector<8x16xf32>
    %297 = arith.mulf %296, %294 : vector<8x16xf32>
    %298 = arith.mulf %289, %239 : vector<8x16xf32>
    %299 = arith.addf %297, %298 : vector<8x16xf32>
    %c7_i32_51 = arith.constant 7 : i32
    %300 = arith.subi %c7_i32_51, %c3_i32 : i32
    %301 = vector.broadcast %300 : i32 to vector<8x1xi32>
    %302 = arith.cmpi slt, %301, %2 : vector<8x1xi32>
    %303 = vector.shape_cast %302 : vector<8x1xi1> to vector<8x1xi1>
    %304 = vector.broadcast %303 : vector<8x1xi1> to vector<8x16xi1>
    %305 = arith.select %304, %269, %238 : vector<8x16xi1>, vector<8x16xf32>
    %306 = vector.broadcast %c3_i32 : i32 to vector<8x1xi32>
    %307 = arith.cmpi slt, %306, %2 : vector<8x1xi32>
    %308 = vector.shape_cast %307 : vector<8x1xi1> to vector<8x1xi1>
    %309 = vector.broadcast %308 : vector<8x1xi1> to vector<8x16xi1>
    %310 = arith.select %309, %299, %239 : vector<8x16xi1>, vector<8x16xf32>
    %311 = tpu.concatenate %305, %310 in 1 : vector<8x16xf32>, vector<8x16xf32> -> vector<8x32xf32>
    %c4_i32 = arith.constant 4 : i32
    %cst_52 = arith.constant dense<0.000000e+00> : vector<8x96xf32>
    %312 = tpu.matmul %311, %0, %cst_52 {dimension_numbers = #tpu.dot_dimension_numbers<[1], [0], [0], [1], [0, 0, 1, 1], [], []>} : vector<8x32xf32>, vector<32x96xf32>, vector<8x96xf32> -> vector<8x96xf32>
    %313 = vector.broadcast %1 : vector<1x96xf32> to vector<8x96xf32>
    %314 = arith.addf %312, %313 : vector<8x96xf32>
    %315 = vector.extract_strided_slice %311 {offsets = [0, 0], sizes = [8, 16], strides = [1, 1]} : vector<8x32xf32> to vector<8x16xf32>
    %316 = vector.extract_strided_slice %311 {offsets = [0, 16], sizes = [8, 16], strides = [1, 1]} : vector<8x32xf32> to vector<8x16xf32>
    %317 = arith.index_cast %c4_i32 : i32 to index
    %c0_53 = arith.constant 0 : index
    %c0_54 = arith.constant 0 : index
    %318 = vector.load %arg2[%317, %c0_53, %c0_54] : memref<8x8x48xf32, #tpu.memory_space<vmem>>, vector<1x8x48xf32>
    %319 = vector.shape_cast %318 : vector<1x8x48xf32> to vector<8x48xf32>
    %320 = vector.extract_strided_slice %314 {offsets = [0, 0], sizes = [8, 48], strides = [1, 1]} : vector<8x96xf32> to vector<8x48xf32>
    %321 = vector.extract_strided_slice %319 {offsets = [0, 0], sizes = [8, 16], strides = [1, 1]} : vector<8x48xf32> to vector<8x16xf32>
    %322 = vector.extract_strided_slice %320 {offsets = [0, 0], sizes = [8, 16], strides = [1, 1]} : vector<8x48xf32> to vector<8x16xf32>
    %323 = arith.addf %321, %322 : vector<8x16xf32>
    %324 = arith.negf %323 : vector<8x16xf32>
    %325 = math.exp %324 : vector<8x16xf32>
    %cst_55 = arith.constant 1.000000e+00 : f32
    %326 = vector.broadcast %cst_55 : f32 to vector<8x16xf32>
    %327 = arith.addf %326, %325 : vector<8x16xf32>
    %328 = arith.divf %326, %327 : vector<8x16xf32>
    %329 = vector.extract_strided_slice %319 {offsets = [0, 16], sizes = [8, 16], strides = [1, 1]} : vector<8x48xf32> to vector<8x16xf32>
    %330 = vector.extract_strided_slice %320 {offsets = [0, 16], sizes = [8, 16], strides = [1, 1]} : vector<8x48xf32> to vector<8x16xf32>
    %331 = arith.addf %329, %330 : vector<8x16xf32>
    %332 = arith.negf %331 : vector<8x16xf32>
    %333 = math.exp %332 : vector<8x16xf32>
    %cst_56 = arith.constant 1.000000e+00 : f32
    %334 = vector.broadcast %cst_56 : f32 to vector<8x16xf32>
    %335 = arith.addf %334, %333 : vector<8x16xf32>
    %336 = arith.divf %334, %335 : vector<8x16xf32>
    %337 = vector.extract_strided_slice %319 {offsets = [0, 32], sizes = [8, 16], strides = [1, 1]} : vector<8x48xf32> to vector<8x16xf32>
    %338 = vector.extract_strided_slice %320 {offsets = [0, 32], sizes = [8, 16], strides = [1, 1]} : vector<8x48xf32> to vector<8x16xf32>
    %339 = arith.mulf %328, %338 : vector<8x16xf32>
    %340 = arith.addf %337, %339 : vector<8x16xf32>
    %341 = math.tanh %340 : vector<8x16xf32>
    %cst_57 = arith.constant 1.000000e+00 : f32
    %342 = vector.broadcast %cst_57 : f32 to vector<8x16xf32>
    %343 = arith.subf %342, %336 : vector<8x16xf32>
    %344 = arith.mulf %343, %341 : vector<8x16xf32>
    %345 = arith.mulf %336, %315 : vector<8x16xf32>
    %346 = arith.addf %344, %345 : vector<8x16xf32>
    %347 = arith.index_cast %c4_i32 : i32 to index
    %c0_58 = arith.constant 0 : index
    %c0_59 = arith.constant 0 : index
    %348 = vector.load %arg1[%347, %c0_58, %c0_59] : memref<8x8x48xf32, #tpu.memory_space<vmem>>, vector<1x8x48xf32>
    %349 = vector.shape_cast %348 : vector<1x8x48xf32> to vector<8x48xf32>
    %350 = vector.extract_strided_slice %314 {offsets = [0, 48], sizes = [8, 48], strides = [1, 1]} : vector<8x96xf32> to vector<8x48xf32>
    %351 = vector.extract_strided_slice %349 {offsets = [0, 0], sizes = [8, 16], strides = [1, 1]} : vector<8x48xf32> to vector<8x16xf32>
    %352 = vector.extract_strided_slice %350 {offsets = [0, 0], sizes = [8, 16], strides = [1, 1]} : vector<8x48xf32> to vector<8x16xf32>
    %353 = arith.addf %351, %352 : vector<8x16xf32>
    %354 = arith.negf %353 : vector<8x16xf32>
    %355 = math.exp %354 : vector<8x16xf32>
    %cst_60 = arith.constant 1.000000e+00 : f32
    %356 = vector.broadcast %cst_60 : f32 to vector<8x16xf32>
    %357 = arith.addf %356, %355 : vector<8x16xf32>
    %358 = arith.divf %356, %357 : vector<8x16xf32>
    %359 = vector.extract_strided_slice %349 {offsets = [0, 16], sizes = [8, 16], strides = [1, 1]} : vector<8x48xf32> to vector<8x16xf32>
    %360 = vector.extract_strided_slice %350 {offsets = [0, 16], sizes = [8, 16], strides = [1, 1]} : vector<8x48xf32> to vector<8x16xf32>
    %361 = arith.addf %359, %360 : vector<8x16xf32>
    %362 = arith.negf %361 : vector<8x16xf32>
    %363 = math.exp %362 : vector<8x16xf32>
    %cst_61 = arith.constant 1.000000e+00 : f32
    %364 = vector.broadcast %cst_61 : f32 to vector<8x16xf32>
    %365 = arith.addf %364, %363 : vector<8x16xf32>
    %366 = arith.divf %364, %365 : vector<8x16xf32>
    %367 = vector.extract_strided_slice %349 {offsets = [0, 32], sizes = [8, 16], strides = [1, 1]} : vector<8x48xf32> to vector<8x16xf32>
    %368 = vector.extract_strided_slice %350 {offsets = [0, 32], sizes = [8, 16], strides = [1, 1]} : vector<8x48xf32> to vector<8x16xf32>
    %369 = arith.mulf %358, %368 : vector<8x16xf32>
    %370 = arith.addf %367, %369 : vector<8x16xf32>
    %371 = math.tanh %370 : vector<8x16xf32>
    %cst_62 = arith.constant 1.000000e+00 : f32
    %372 = vector.broadcast %cst_62 : f32 to vector<8x16xf32>
    %373 = arith.subf %372, %366 : vector<8x16xf32>
    %374 = arith.mulf %373, %371 : vector<8x16xf32>
    %375 = arith.mulf %366, %316 : vector<8x16xf32>
    %376 = arith.addf %374, %375 : vector<8x16xf32>
    %c7_i32_63 = arith.constant 7 : i32
    %377 = arith.subi %c7_i32_63, %c4_i32 : i32
    %378 = vector.broadcast %377 : i32 to vector<8x1xi32>
    %379 = arith.cmpi slt, %378, %2 : vector<8x1xi32>
    %380 = vector.shape_cast %379 : vector<8x1xi1> to vector<8x1xi1>
    %381 = vector.broadcast %380 : vector<8x1xi1> to vector<8x16xi1>
    %382 = arith.select %381, %346, %315 : vector<8x16xi1>, vector<8x16xf32>
    %383 = vector.broadcast %c4_i32 : i32 to vector<8x1xi32>
    %384 = arith.cmpi slt, %383, %2 : vector<8x1xi32>
    %385 = vector.shape_cast %384 : vector<8x1xi1> to vector<8x1xi1>
    %386 = vector.broadcast %385 : vector<8x1xi1> to vector<8x16xi1>
    %387 = arith.select %386, %376, %316 : vector<8x16xi1>, vector<8x16xf32>
    %388 = tpu.concatenate %382, %387 in 1 : vector<8x16xf32>, vector<8x16xf32> -> vector<8x32xf32>
    %c5_i32 = arith.constant 5 : i32
    %cst_64 = arith.constant dense<0.000000e+00> : vector<8x96xf32>
    %389 = tpu.matmul %388, %0, %cst_64 {dimension_numbers = #tpu.dot_dimension_numbers<[1], [0], [0], [1], [0, 0, 1, 1], [], []>} : vector<8x32xf32>, vector<32x96xf32>, vector<8x96xf32> -> vector<8x96xf32>
    %390 = vector.broadcast %1 : vector<1x96xf32> to vector<8x96xf32>
    %391 = arith.addf %389, %390 : vector<8x96xf32>
    %392 = vector.extract_strided_slice %388 {offsets = [0, 0], sizes = [8, 16], strides = [1, 1]} : vector<8x32xf32> to vector<8x16xf32>
    %393 = vector.extract_strided_slice %388 {offsets = [0, 16], sizes = [8, 16], strides = [1, 1]} : vector<8x32xf32> to vector<8x16xf32>
    %394 = arith.index_cast %c5_i32 : i32 to index
    %c0_65 = arith.constant 0 : index
    %c0_66 = arith.constant 0 : index
    %395 = vector.load %arg2[%394, %c0_65, %c0_66] : memref<8x8x48xf32, #tpu.memory_space<vmem>>, vector<1x8x48xf32>
    %396 = vector.shape_cast %395 : vector<1x8x48xf32> to vector<8x48xf32>
    %397 = vector.extract_strided_slice %391 {offsets = [0, 0], sizes = [8, 48], strides = [1, 1]} : vector<8x96xf32> to vector<8x48xf32>
    %398 = vector.extract_strided_slice %396 {offsets = [0, 0], sizes = [8, 16], strides = [1, 1]} : vector<8x48xf32> to vector<8x16xf32>
    %399 = vector.extract_strided_slice %397 {offsets = [0, 0], sizes = [8, 16], strides = [1, 1]} : vector<8x48xf32> to vector<8x16xf32>
    %400 = arith.addf %398, %399 : vector<8x16xf32>
    %401 = arith.negf %400 : vector<8x16xf32>
    %402 = math.exp %401 : vector<8x16xf32>
    %cst_67 = arith.constant 1.000000e+00 : f32
    %403 = vector.broadcast %cst_67 : f32 to vector<8x16xf32>
    %404 = arith.addf %403, %402 : vector<8x16xf32>
    %405 = arith.divf %403, %404 : vector<8x16xf32>
    %406 = vector.extract_strided_slice %396 {offsets = [0, 16], sizes = [8, 16], strides = [1, 1]} : vector<8x48xf32> to vector<8x16xf32>
    %407 = vector.extract_strided_slice %397 {offsets = [0, 16], sizes = [8, 16], strides = [1, 1]} : vector<8x48xf32> to vector<8x16xf32>
    %408 = arith.addf %406, %407 : vector<8x16xf32>
    %409 = arith.negf %408 : vector<8x16xf32>
    %410 = math.exp %409 : vector<8x16xf32>
    %cst_68 = arith.constant 1.000000e+00 : f32
    %411 = vector.broadcast %cst_68 : f32 to vector<8x16xf32>
    %412 = arith.addf %411, %410 : vector<8x16xf32>
    %413 = arith.divf %411, %412 : vector<8x16xf32>
    %414 = vector.extract_strided_slice %396 {offsets = [0, 32], sizes = [8, 16], strides = [1, 1]} : vector<8x48xf32> to vector<8x16xf32>
    %415 = vector.extract_strided_slice %397 {offsets = [0, 32], sizes = [8, 16], strides = [1, 1]} : vector<8x48xf32> to vector<8x16xf32>
    %416 = arith.mulf %405, %415 : vector<8x16xf32>
    %417 = arith.addf %414, %416 : vector<8x16xf32>
    %418 = math.tanh %417 : vector<8x16xf32>
    %cst_69 = arith.constant 1.000000e+00 : f32
    %419 = vector.broadcast %cst_69 : f32 to vector<8x16xf32>
    %420 = arith.subf %419, %413 : vector<8x16xf32>
    %421 = arith.mulf %420, %418 : vector<8x16xf32>
    %422 = arith.mulf %413, %392 : vector<8x16xf32>
    %423 = arith.addf %421, %422 : vector<8x16xf32>
    %424 = arith.index_cast %c5_i32 : i32 to index
    %c0_70 = arith.constant 0 : index
    %c0_71 = arith.constant 0 : index
    %425 = vector.load %arg1[%424, %c0_70, %c0_71] : memref<8x8x48xf32, #tpu.memory_space<vmem>>, vector<1x8x48xf32>
    %426 = vector.shape_cast %425 : vector<1x8x48xf32> to vector<8x48xf32>
    %427 = vector.extract_strided_slice %391 {offsets = [0, 48], sizes = [8, 48], strides = [1, 1]} : vector<8x96xf32> to vector<8x48xf32>
    %428 = vector.extract_strided_slice %426 {offsets = [0, 0], sizes = [8, 16], strides = [1, 1]} : vector<8x48xf32> to vector<8x16xf32>
    %429 = vector.extract_strided_slice %427 {offsets = [0, 0], sizes = [8, 16], strides = [1, 1]} : vector<8x48xf32> to vector<8x16xf32>
    %430 = arith.addf %428, %429 : vector<8x16xf32>
    %431 = arith.negf %430 : vector<8x16xf32>
    %432 = math.exp %431 : vector<8x16xf32>
    %cst_72 = arith.constant 1.000000e+00 : f32
    %433 = vector.broadcast %cst_72 : f32 to vector<8x16xf32>
    %434 = arith.addf %433, %432 : vector<8x16xf32>
    %435 = arith.divf %433, %434 : vector<8x16xf32>
    %436 = vector.extract_strided_slice %426 {offsets = [0, 16], sizes = [8, 16], strides = [1, 1]} : vector<8x48xf32> to vector<8x16xf32>
    %437 = vector.extract_strided_slice %427 {offsets = [0, 16], sizes = [8, 16], strides = [1, 1]} : vector<8x48xf32> to vector<8x16xf32>
    %438 = arith.addf %436, %437 : vector<8x16xf32>
    %439 = arith.negf %438 : vector<8x16xf32>
    %440 = math.exp %439 : vector<8x16xf32>
    %cst_73 = arith.constant 1.000000e+00 : f32
    %441 = vector.broadcast %cst_73 : f32 to vector<8x16xf32>
    %442 = arith.addf %441, %440 : vector<8x16xf32>
    %443 = arith.divf %441, %442 : vector<8x16xf32>
    %444 = vector.extract_strided_slice %426 {offsets = [0, 32], sizes = [8, 16], strides = [1, 1]} : vector<8x48xf32> to vector<8x16xf32>
    %445 = vector.extract_strided_slice %427 {offsets = [0, 32], sizes = [8, 16], strides = [1, 1]} : vector<8x48xf32> to vector<8x16xf32>
    %446 = arith.mulf %435, %445 : vector<8x16xf32>
    %447 = arith.addf %444, %446 : vector<8x16xf32>
    %448 = math.tanh %447 : vector<8x16xf32>
    %cst_74 = arith.constant 1.000000e+00 : f32
    %449 = vector.broadcast %cst_74 : f32 to vector<8x16xf32>
    %450 = arith.subf %449, %443 : vector<8x16xf32>
    %451 = arith.mulf %450, %448 : vector<8x16xf32>
    %452 = arith.mulf %443, %393 : vector<8x16xf32>
    %453 = arith.addf %451, %452 : vector<8x16xf32>
    %c7_i32_75 = arith.constant 7 : i32
    %454 = arith.subi %c7_i32_75, %c5_i32 : i32
    %455 = vector.broadcast %454 : i32 to vector<8x1xi32>
    %456 = arith.cmpi slt, %455, %2 : vector<8x1xi32>
    %457 = vector.shape_cast %456 : vector<8x1xi1> to vector<8x1xi1>
    %458 = vector.broadcast %457 : vector<8x1xi1> to vector<8x16xi1>
    %459 = arith.select %458, %423, %392 : vector<8x16xi1>, vector<8x16xf32>
    %460 = vector.broadcast %c5_i32 : i32 to vector<8x1xi32>
    %461 = arith.cmpi slt, %460, %2 : vector<8x1xi32>
    %462 = vector.shape_cast %461 : vector<8x1xi1> to vector<8x1xi1>
    %463 = vector.broadcast %462 : vector<8x1xi1> to vector<8x16xi1>
    %464 = arith.select %463, %453, %393 : vector<8x16xi1>, vector<8x16xf32>
    %465 = tpu.concatenate %459, %464 in 1 : vector<8x16xf32>, vector<8x16xf32> -> vector<8x32xf32>
    %c6_i32 = arith.constant 6 : i32
    %cst_76 = arith.constant dense<0.000000e+00> : vector<8x96xf32>
    %466 = tpu.matmul %465, %0, %cst_76 {dimension_numbers = #tpu.dot_dimension_numbers<[1], [0], [0], [1], [0, 0, 1, 1], [], []>} : vector<8x32xf32>, vector<32x96xf32>, vector<8x96xf32> -> vector<8x96xf32>
    %467 = vector.broadcast %1 : vector<1x96xf32> to vector<8x96xf32>
    %468 = arith.addf %466, %467 : vector<8x96xf32>
    %469 = vector.extract_strided_slice %465 {offsets = [0, 0], sizes = [8, 16], strides = [1, 1]} : vector<8x32xf32> to vector<8x16xf32>
    %470 = vector.extract_strided_slice %465 {offsets = [0, 16], sizes = [8, 16], strides = [1, 1]} : vector<8x32xf32> to vector<8x16xf32>
    %471 = arith.index_cast %c6_i32 : i32 to index
    %c0_77 = arith.constant 0 : index
    %c0_78 = arith.constant 0 : index
    %472 = vector.load %arg2[%471, %c0_77, %c0_78] : memref<8x8x48xf32, #tpu.memory_space<vmem>>, vector<1x8x48xf32>
    %473 = vector.shape_cast %472 : vector<1x8x48xf32> to vector<8x48xf32>
    %474 = vector.extract_strided_slice %468 {offsets = [0, 0], sizes = [8, 48], strides = [1, 1]} : vector<8x96xf32> to vector<8x48xf32>
    %475 = vector.extract_strided_slice %473 {offsets = [0, 0], sizes = [8, 16], strides = [1, 1]} : vector<8x48xf32> to vector<8x16xf32>
    %476 = vector.extract_strided_slice %474 {offsets = [0, 0], sizes = [8, 16], strides = [1, 1]} : vector<8x48xf32> to vector<8x16xf32>
    %477 = arith.addf %475, %476 : vector<8x16xf32>
    %478 = arith.negf %477 : vector<8x16xf32>
    %479 = math.exp %478 : vector<8x16xf32>
    %cst_79 = arith.constant 1.000000e+00 : f32
    %480 = vector.broadcast %cst_79 : f32 to vector<8x16xf32>
    %481 = arith.addf %480, %479 : vector<8x16xf32>
    %482 = arith.divf %480, %481 : vector<8x16xf32>
    %483 = vector.extract_strided_slice %473 {offsets = [0, 16], sizes = [8, 16], strides = [1, 1]} : vector<8x48xf32> to vector<8x16xf32>
    %484 = vector.extract_strided_slice %474 {offsets = [0, 16], sizes = [8, 16], strides = [1, 1]} : vector<8x48xf32> to vector<8x16xf32>
    %485 = arith.addf %483, %484 : vector<8x16xf32>
    %486 = arith.negf %485 : vector<8x16xf32>
    %487 = math.exp %486 : vector<8x16xf32>
    %cst_80 = arith.constant 1.000000e+00 : f32
    %488 = vector.broadcast %cst_80 : f32 to vector<8x16xf32>
    %489 = arith.addf %488, %487 : vector<8x16xf32>
    %490 = arith.divf %488, %489 : vector<8x16xf32>
    %491 = vector.extract_strided_slice %473 {offsets = [0, 32], sizes = [8, 16], strides = [1, 1]} : vector<8x48xf32> to vector<8x16xf32>
    %492 = vector.extract_strided_slice %474 {offsets = [0, 32], sizes = [8, 16], strides = [1, 1]} : vector<8x48xf32> to vector<8x16xf32>
    %493 = arith.mulf %482, %492 : vector<8x16xf32>
    %494 = arith.addf %491, %493 : vector<8x16xf32>
    %495 = math.tanh %494 : vector<8x16xf32>
    %cst_81 = arith.constant 1.000000e+00 : f32
    %496 = vector.broadcast %cst_81 : f32 to vector<8x16xf32>
    %497 = arith.subf %496, %490 : vector<8x16xf32>
    %498 = arith.mulf %497, %495 : vector<8x16xf32>
    %499 = arith.mulf %490, %469 : vector<8x16xf32>
    %500 = arith.addf %498, %499 : vector<8x16xf32>
    %501 = arith.index_cast %c6_i32 : i32 to index
    %c0_82 = arith.constant 0 : index
    %c0_83 = arith.constant 0 : index
    %502 = vector.load %arg1[%501, %c0_82, %c0_83] : memref<8x8x48xf32, #tpu.memory_space<vmem>>, vector<1x8x48xf32>
    %503 = vector.shape_cast %502 : vector<1x8x48xf32> to vector<8x48xf32>
    %504 = vector.extract_strided_slice %468 {offsets = [0, 48], sizes = [8, 48], strides = [1, 1]} : vector<8x96xf32> to vector<8x48xf32>
    %505 = vector.extract_strided_slice %503 {offsets = [0, 0], sizes = [8, 16], strides = [1, 1]} : vector<8x48xf32> to vector<8x16xf32>
    %506 = vector.extract_strided_slice %504 {offsets = [0, 0], sizes = [8, 16], strides = [1, 1]} : vector<8x48xf32> to vector<8x16xf32>
    %507 = arith.addf %505, %506 : vector<8x16xf32>
    %508 = arith.negf %507 : vector<8x16xf32>
    %509 = math.exp %508 : vector<8x16xf32>
    %cst_84 = arith.constant 1.000000e+00 : f32
    %510 = vector.broadcast %cst_84 : f32 to vector<8x16xf32>
    %511 = arith.addf %510, %509 : vector<8x16xf32>
    %512 = arith.divf %510, %511 : vector<8x16xf32>
    %513 = vector.extract_strided_slice %503 {offsets = [0, 16], sizes = [8, 16], strides = [1, 1]} : vector<8x48xf32> to vector<8x16xf32>
    %514 = vector.extract_strided_slice %504 {offsets = [0, 16], sizes = [8, 16], strides = [1, 1]} : vector<8x48xf32> to vector<8x16xf32>
    %515 = arith.addf %513, %514 : vector<8x16xf32>
    %516 = arith.negf %515 : vector<8x16xf32>
    %517 = math.exp %516 : vector<8x16xf32>
    %cst_85 = arith.constant 1.000000e+00 : f32
    %518 = vector.broadcast %cst_85 : f32 to vector<8x16xf32>
    %519 = arith.addf %518, %517 : vector<8x16xf32>
    %520 = arith.divf %518, %519 : vector<8x16xf32>
    %521 = vector.extract_strided_slice %503 {offsets = [0, 32], sizes = [8, 16], strides = [1, 1]} : vector<8x48xf32> to vector<8x16xf32>
    %522 = vector.extract_strided_slice %504 {offsets = [0, 32], sizes = [8, 16], strides = [1, 1]} : vector<8x48xf32> to vector<8x16xf32>
    %523 = arith.mulf %512, %522 : vector<8x16xf32>
    %524 = arith.addf %521, %523 : vector<8x16xf32>
    %525 = math.tanh %524 : vector<8x16xf32>
    %cst_86 = arith.constant 1.000000e+00 : f32
    %526 = vector.broadcast %cst_86 : f32 to vector<8x16xf32>
    %527 = arith.subf %526, %520 : vector<8x16xf32>
    %528 = arith.mulf %527, %525 : vector<8x16xf32>
    %529 = arith.mulf %520, %470 : vector<8x16xf32>
    %530 = arith.addf %528, %529 : vector<8x16xf32>
    %c7_i32_87 = arith.constant 7 : i32
    %531 = arith.subi %c7_i32_87, %c6_i32 : i32
    %532 = vector.broadcast %531 : i32 to vector<8x1xi32>
    %533 = arith.cmpi slt, %532, %2 : vector<8x1xi32>
    %534 = vector.shape_cast %533 : vector<8x1xi1> to vector<8x1xi1>
    %535 = vector.broadcast %534 : vector<8x1xi1> to vector<8x16xi1>
    %536 = arith.select %535, %500, %469 : vector<8x16xi1>, vector<8x16xf32>
    %537 = vector.broadcast %c6_i32 : i32 to vector<8x1xi32>
    %538 = arith.cmpi slt, %537, %2 : vector<8x1xi32>
    %539 = vector.shape_cast %538 : vector<8x1xi1> to vector<8x1xi1>
    %540 = vector.broadcast %539 : vector<8x1xi1> to vector<8x16xi1>
    %541 = arith.select %540, %530, %470 : vector<8x16xi1>, vector<8x16xf32>
    %542 = tpu.concatenate %536, %541 in 1 : vector<8x16xf32>, vector<8x16xf32> -> vector<8x32xf32>
    %c7_i32_88 = arith.constant 7 : i32
    %cst_89 = arith.constant dense<0.000000e+00> : vector<8x96xf32>
    %543 = tpu.matmul %542, %0, %cst_89 {dimension_numbers = #tpu.dot_dimension_numbers<[1], [0], [0], [1], [0, 0, 1, 1], [], []>} : vector<8x32xf32>, vector<32x96xf32>, vector<8x96xf32> -> vector<8x96xf32>
    %544 = vector.broadcast %1 : vector<1x96xf32> to vector<8x96xf32>
    %545 = arith.addf %543, %544 : vector<8x96xf32>
    %546 = vector.extract_strided_slice %542 {offsets = [0, 0], sizes = [8, 16], strides = [1, 1]} : vector<8x32xf32> to vector<8x16xf32>
    %547 = vector.extract_strided_slice %542 {offsets = [0, 16], sizes = [8, 16], strides = [1, 1]} : vector<8x32xf32> to vector<8x16xf32>
    %548 = arith.index_cast %c7_i32_88 : i32 to index
    %c0_90 = arith.constant 0 : index
    %c0_91 = arith.constant 0 : index
    %549 = vector.load %arg2[%548, %c0_90, %c0_91] : memref<8x8x48xf32, #tpu.memory_space<vmem>>, vector<1x8x48xf32>
    %550 = vector.shape_cast %549 : vector<1x8x48xf32> to vector<8x48xf32>
    %551 = vector.extract_strided_slice %545 {offsets = [0, 0], sizes = [8, 48], strides = [1, 1]} : vector<8x96xf32> to vector<8x48xf32>
    %552 = vector.extract_strided_slice %550 {offsets = [0, 0], sizes = [8, 16], strides = [1, 1]} : vector<8x48xf32> to vector<8x16xf32>
    %553 = vector.extract_strided_slice %551 {offsets = [0, 0], sizes = [8, 16], strides = [1, 1]} : vector<8x48xf32> to vector<8x16xf32>
    %554 = arith.addf %552, %553 : vector<8x16xf32>
    %555 = arith.negf %554 : vector<8x16xf32>
    %556 = math.exp %555 : vector<8x16xf32>
    %cst_92 = arith.constant 1.000000e+00 : f32
    %557 = vector.broadcast %cst_92 : f32 to vector<8x16xf32>
    %558 = arith.addf %557, %556 : vector<8x16xf32>
    %559 = arith.divf %557, %558 : vector<8x16xf32>
    %560 = vector.extract_strided_slice %550 {offsets = [0, 16], sizes = [8, 16], strides = [1, 1]} : vector<8x48xf32> to vector<8x16xf32>
    %561 = vector.extract_strided_slice %551 {offsets = [0, 16], sizes = [8, 16], strides = [1, 1]} : vector<8x48xf32> to vector<8x16xf32>
    %562 = arith.addf %560, %561 : vector<8x16xf32>
    %563 = arith.negf %562 : vector<8x16xf32>
    %564 = math.exp %563 : vector<8x16xf32>
    %cst_93 = arith.constant 1.000000e+00 : f32
    %565 = vector.broadcast %cst_93 : f32 to vector<8x16xf32>
    %566 = arith.addf %565, %564 : vector<8x16xf32>
    %567 = arith.divf %565, %566 : vector<8x16xf32>
    %568 = vector.extract_strided_slice %550 {offsets = [0, 32], sizes = [8, 16], strides = [1, 1]} : vector<8x48xf32> to vector<8x16xf32>
    %569 = vector.extract_strided_slice %551 {offsets = [0, 32], sizes = [8, 16], strides = [1, 1]} : vector<8x48xf32> to vector<8x16xf32>
    %570 = arith.mulf %559, %569 : vector<8x16xf32>
    %571 = arith.addf %568, %570 : vector<8x16xf32>
    %572 = math.tanh %571 : vector<8x16xf32>
    %cst_94 = arith.constant 1.000000e+00 : f32
    %573 = vector.broadcast %cst_94 : f32 to vector<8x16xf32>
    %574 = arith.subf %573, %567 : vector<8x16xf32>
    %575 = arith.mulf %574, %572 : vector<8x16xf32>
    %576 = arith.mulf %567, %546 : vector<8x16xf32>
    %577 = arith.addf %575, %576 : vector<8x16xf32>
    %578 = arith.index_cast %c7_i32_88 : i32 to index
    %c0_95 = arith.constant 0 : index
    %c0_96 = arith.constant 0 : index
    %579 = vector.load %arg1[%578, %c0_95, %c0_96] : memref<8x8x48xf32, #tpu.memory_space<vmem>>, vector<1x8x48xf32>
    %580 = vector.shape_cast %579 : vector<1x8x48xf32> to vector<8x48xf32>
    %581 = vector.extract_strided_slice %545 {offsets = [0, 48], sizes = [8, 48], strides = [1, 1]} : vector<8x96xf32> to vector<8x48xf32>
    %582 = vector.extract_strided_slice %580 {offsets = [0, 0], sizes = [8, 16], strides = [1, 1]} : vector<8x48xf32> to vector<8x16xf32>
    %583 = vector.extract_strided_slice %581 {offsets = [0, 0], sizes = [8, 16], strides = [1, 1]} : vector<8x48xf32> to vector<8x16xf32>
    %584 = arith.addf %582, %583 : vector<8x16xf32>
    %585 = arith.negf %584 : vector<8x16xf32>
    %586 = math.exp %585 : vector<8x16xf32>
    %cst_97 = arith.constant 1.000000e+00 : f32
    %587 = vector.broadcast %cst_97 : f32 to vector<8x16xf32>
    %588 = arith.addf %587, %586 : vector<8x16xf32>
    %589 = arith.divf %587, %588 : vector<8x16xf32>
    %590 = vector.extract_strided_slice %580 {offsets = [0, 16], sizes = [8, 16], strides = [1, 1]} : vector<8x48xf32> to vector<8x16xf32>
    %591 = vector.extract_strided_slice %581 {offsets = [0, 16], sizes = [8, 16], strides = [1, 1]} : vector<8x48xf32> to vector<8x16xf32>
    %592 = arith.addf %590, %591 : vector<8x16xf32>
    %593 = arith.negf %592 : vector<8x16xf32>
    %594 = math.exp %593 : vector<8x16xf32>
    %cst_98 = arith.constant 1.000000e+00 : f32
    %595 = vector.broadcast %cst_98 : f32 to vector<8x16xf32>
    %596 = arith.addf %595, %594 : vector<8x16xf32>
    %597 = arith.divf %595, %596 : vector<8x16xf32>
    %598 = vector.extract_strided_slice %580 {offsets = [0, 32], sizes = [8, 16], strides = [1, 1]} : vector<8x48xf32> to vector<8x16xf32>
    %599 = vector.extract_strided_slice %581 {offsets = [0, 32], sizes = [8, 16], strides = [1, 1]} : vector<8x48xf32> to vector<8x16xf32>
    %600 = arith.mulf %589, %599 : vector<8x16xf32>
    %601 = arith.addf %598, %600 : vector<8x16xf32>
    %602 = math.tanh %601 : vector<8x16xf32>
    %cst_99 = arith.constant 1.000000e+00 : f32
    %603 = vector.broadcast %cst_99 : f32 to vector<8x16xf32>
    %604 = arith.subf %603, %597 : vector<8x16xf32>
    %605 = arith.mulf %604, %602 : vector<8x16xf32>
    %606 = arith.mulf %597, %547 : vector<8x16xf32>
    %607 = arith.addf %605, %606 : vector<8x16xf32>
    %c7_i32_100 = arith.constant 7 : i32
    %608 = arith.subi %c7_i32_100, %c7_i32_88 : i32
    %609 = vector.broadcast %608 : i32 to vector<8x1xi32>
    %610 = arith.cmpi slt, %609, %2 : vector<8x1xi32>
    %611 = vector.shape_cast %610 : vector<8x1xi1> to vector<8x1xi1>
    %612 = vector.broadcast %611 : vector<8x1xi1> to vector<8x16xi1>
    %613 = arith.select %612, %577, %546 : vector<8x16xi1>, vector<8x16xf32>
    %614 = vector.broadcast %c7_i32_88 : i32 to vector<8x1xi32>
    %615 = arith.cmpi slt, %614, %2 : vector<8x1xi32>
    %616 = vector.shape_cast %615 : vector<8x1xi1> to vector<8x1xi1>
    %617 = vector.broadcast %616 : vector<8x1xi1> to vector<8x16xi1>
    %618 = arith.select %617, %607, %547 : vector<8x16xi1>, vector<8x16xf32>
    %619 = tpu.concatenate %613, %618 in 1 : vector<8x16xf32>, vector<8x16xf32> -> vector<8x32xf32>
    %c8_i32 = arith.constant 8 : i32
    %c0_101 = arith.constant 0 : index
    %c0_102 = arith.constant 0 : index
    %620 = vector.load %arg6[%c0_101, %c0_102] : memref<8x32xf32, #tpu.memory_space<vmem>>, vector<8x32xf32>
    tpu.vector_store %arg6[%c0_101, %c0_102], %619 {strides = array<i32>} : memref<8x32xf32, #tpu.memory_space<vmem>>, vector<8x32xf32>,
    return
  }
  func.func @transform_0(%arg0: i32) -> (i32, i32, i32) {
    %c0_i32 = arith.constant 0 : i32
    %c0_i32_0 = arith.constant 0 : i32
    %c0_i32_1 = arith.constant 0 : i32
    %c0_i32_2 = arith.constant 0 : i32
    return %c0_i32, %c0_i32_0, %c0_i32_1 : i32, i32, i32
  }
  func.func @transform_1(%arg0: i32) -> (i32, i32, i32) {
    %c0_i32 = arith.constant 0 : i32
    %c0_i32_0 = arith.constant 0 : i32
    %c0_i32_1 = arith.constant 0 : i32
    %c0_i32_2 = arith.constant 0 : i32
    return %c0_i32, %c0_i32_0, %c0_i32_1 : i32, i32, i32
  }
  func.func @transform_2(%arg0: i32) -> (i32, i32) {
    %c0_i32 = arith.constant 0 : i32
    %c0_i32_0 = arith.constant 0 : i32
    %c0_i32_1 = arith.constant 0 : i32
    return %c0_i32, %c0_i32_0 : i32, i32
  }
  func.func @transform_3(%arg0: i32) -> (i32, i32) {
    %c0_i32 = arith.constant 0 : i32
    %c0_i32_0 = arith.constant 0 : i32
    %c0_i32_1 = arith.constant 0 : i32
    return %c0_i32, %c0_i32_0 : i32, i32
  }
  func.func @transform_4(%arg0: i32) -> (i32, i32) {
    %c0_i32 = arith.constant 0 : i32
    %c0_i32_0 = arith.constant 0 : i32
    %c0_i32_1 = arith.constant 0 : i32
    return %c0_i32, %c0_i32_0 : i32, i32
  }
  func.func @transform_5(%arg0: i32) -> (i32, i32) {
    %c0_i32 = arith.constant 0 : i32
    %c0_i32_0 = arith.constant 0 : i32
    %c0_i32_1 = arith.constant 0 : i32
    return %c0_i32, %c0_i32_0 : i32, i32
  }
}

</mosaic_0001>

<llo_original>
// kernel: tpu_custom_call.1
$region0: #{tpu_custom_call.1}
  #allocation0 [shape = 'u32[]', space=smem, size = 0x4, offset = 0x4, fixed_abs, tag = 'smem constant byte address 0x4 - core index']
  #allocation1 [shape = 'u32[144,128]{1,0:T(1,128)}', space=vmem, size = 0x12000, scoped, tag = 'internal scratch']
  %s0 = inlined_call_operand.hbm [shape: f32[8,8,48], index: 0, kind: input, shape index: {}]
  %s1 = inlined_call_operand.hbm [shape: f32[8,8,48], index: 1, kind: input, shape index: {}]
  %s2 = inlined_call_operand.vmem [shape: s32[8,1], index: 2, kind: input, shape index: {}]
  %s3 = inlined_call_operand.hbm [shape: f32[32,96], index: 3, kind: input, shape index: {}]
  %s4 = inlined_call_operand.vmem [shape: f32[1,96], index: 4, kind: input, shape index: {}]
  %s5 = inlined_call_operand.hbm [shape: f32[8,32], index: 5, kind: output, shape index: {}]
  %s6 = sld [smem:[#allocation0]]
  $region42: #{tpu_custom_call.1} parent=0
    _
  %s8 = ssub.s32 1, %s6
  %s9 = scalar_select 0, %s8, %s6
  $region1: #{tpu_custom_call.1} parent=0
    #allocation2 [shape = 'u8[32768]{0}', space=vmem, size = 0x8000, scoped, tag = 'input window, operand 0, single buffered']
    #allocation3 [shape = 's32[1]{0}', space=sflag, size = 0x4, scoped, tag = 'scoped memory for tpu_custom_call.1']
    #allocation4 [shape = 's32[1]{0}', space=sflag, size = 0x4, scoped, tag = 'scoped memory for tpu_custom_call.1']
    #allocation5 [shape = 'u8[32768]{0}', space=vmem, size = 0x8000, scoped, tag = 'input window, operand 1, single buffered']
    #allocation6 [shape = 's32[1]{0}', space=sflag, size = 0x4, scoped, tag = 'scoped memory for tpu_custom_call.1']
    #allocation7 [shape = 'u8[16384]{0}', space=vmem, size = 0x4000, scoped, tag = 'input window, operand 3, single buffered']
    #allocation8 [shape = 'u8[4096]{0}', space=vmem, size = 0x1000, scoped, tag = 'output window, operand 0, single buffered']
    %10 = vsyncpa [#allocation3], 0
    %11 = vsyncpa [#allocation6], 0
    %12 = vsyncpa [#allocation4], 0
    // Predicated region
    $region2: #{tpu_custom_call.1} parent=1 // pred_check
      _
    $region3: #{tpu_custom_call.1} parent=1 // pred_check_branch
      %14 = sbr.rel (0) target = $region5
    $region4: #{tpu_custom_call.1} parent=1 // pred_region
      %s16 = ssub.s32 1024, 1024
      %17 = vsyncadd [#allocation3], %s16
      %s18 = sshll.u32 [#allocation2], 4
      %s19 = int_to_ptr.vmem [resolvable:$true] %s18
      %24 = dma.hbm_to_vmem [thread:$0]  %s0, 1024, %s19, [#allocation3], 128, 128, 8
    $region5: #{tpu_custom_call.1} parent=1 // pred_fallthru
      _
    // Predicated region
    $region6: #{tpu_custom_call.1} parent=1 // pred_check
      _
    $region7: #{tpu_custom_call.1} parent=1 // pred_check_branch
      %26 = sbr.rel (0) target = $region9
    $region8: #{tpu_custom_call.1} parent=1 // pred_region
      %s28 = ssub.s32 1024, 1024
      %29 = vsyncadd [#allocation6], %s28
      %s30 = sshll.u32 [#allocation5], 4
      %s31 = int_to_ptr.vmem [resolvable:$true] %s30
      %36 = dma.hbm_to_vmem [thread:$0]  %s1, 1024, %s31, [#allocation6], 128, 128, 8
    $region9: #{tpu_custom_call.1} parent=1 // pred_fallthru
      _
    // Predicated region
    $region10: #{tpu_custom_call.1} parent=1 // pred_check
      _
    $region11: #{tpu_custom_call.1} parent=1 // pred_check_branch
      %38 = sbr.rel (0) target = $region13
    $region12: #{tpu_custom_call.1} parent=1 // pred_region
      _
    $region13: #{tpu_custom_call.1} parent=1 // pred_fallthru
      _
    // Predicated region
    $region14: #{tpu_custom_call.1} parent=1 // pred_check
      _
    $region15: #{tpu_custom_call.1} parent=1 // pred_check_branch
      %40 = sbr.rel (0) target = $region17
    $region16: #{tpu_custom_call.1} parent=1 // pred_region
      %s42 = ssub.s32 512, 512
      %43 = vsyncadd [#allocation6], %s42
      %s44 = sshll.u32 [#allocation7], 4
      %s45 = int_to_ptr.vmem [resolvable:$true] %s44
      %50 = dma.hbm_to_vmem [thread:$0]  %s3, 512, %s45, [#allocation6], 128, 128, 8
    $region17: #{tpu_custom_call.1} parent=1 // pred_fallthru
      _
    // Predicated region
    $region18: #{tpu_custom_call.1} parent=1 // pred_check
      _
    $region19: #{tpu_custom_call.1} parent=1 // pred_check_branch
      %52 = sbr.rel (0) target = $region21
    $region20: #{tpu_custom_call.1} parent=1 // pred_region
      _
    $region21: #{tpu_custom_call.1} parent=1 // pred_fallthru
      _
    // Predicated region
    $region22: #{tpu_custom_call.1} parent=1 // pred_check
      _
    $region23: #{tpu_custom_call.1} parent=1 // pred_check_branch
      %54 = sbr.rel (0) target = $region25
    $region24: #{tpu_custom_call.1} parent=1 // pred_region
      %55 = dma.done [#allocation3], 1024
    $region25: #{tpu_custom_call.1} parent=1 // pred_fallthru
      _
    // Predicated region
    $region26: #{tpu_custom_call.1} parent=1 // pred_check
      _
    $region27: #{tpu_custom_call.1} parent=1 // pred_check_branch
      %57 = sbr.rel (0) target = $region29
    $region28: #{tpu_custom_call.1} parent=1 // pred_region
      %58 = dma.done [#allocation6], 1024
    $region29: #{tpu_custom_call.1} parent=1 // pred_fallthru
      _
    // Predicated region
    $region30: #{tpu_custom_call.1} parent=1 // pred_check
      _
    $region31: #{tpu_custom_call.1} parent=1 // pred_check_branch
      %60 = sbr.rel (0) target = $region33
    $region32: #{tpu_custom_call.1} parent=1 // pred_region
      %61 = dma.done [#allocation6], 512
    $region33: #{tpu_custom_call.1} parent=1 // pred_fallthru
      _
    %v62 = vld [vmem:[#allocation7] sm:$0xff]
    %v63 = vld [vmem:[#allocation7 + $0x8] sm:$0xff]
    %v64 = vld [vmem:[#allocation7 + $0x10] sm:$0xff]
    %v65 = vld [vmem:[#allocation7 + $0x18] sm:$0xff]
    %v66 = vld [vmem:[%s4] sm:$0x1]
    %v67 = vld [vmem:[%s2] sm:$0xff]
    %v69 = vlaneseq
    %v70 = vshrl.u32 %v69, 7
    %v71 = vsub.s32 0, %v70
    %v72 = vrot.slane %v66, %v71
    %vm74 = vcmask 261120
    %v76 = vsel %vm74, 0.0, 0
    %78 = vmatprep.subr.mxu0 0.0
    %79 = vmatpush1.msra.mxu0 0.0
    %80 = vmatprep.subr.mxu0 0.0
    %81 = vmatpush1.msra.mxu0 0.0
    %82 = vmatprep.subr.mxu0 0.0
    %83 = vmatpush1.msra.mxu0 0.0
    %84 = vmatprep.subr.mxu0 0.0
    %85 = vmatpush1.msra.mxu0 0.0
    %86 = vmatprep.subr.mxu0 0.0
    %87 = vmatpush1.msra.mxu0 0.0
    %88 = vmatprep.subr.mxu0 0.0
    %89 = vmatpush1.msra.mxu0 0.0
    %90 = vmatprep.subr.mxu0 0.0
    %91 = vmatpush1.msra.mxu0 0.0
    %92 = vmatprep.subr.mxu0 0.0
    %93 = vmatpush1.msra.mxu0 0.0
    %94 = vmatprep.subr.mxu0 0.0
    %95 = vmatpush1.msra.mxu0 0.0
    %96 = vmatprep.subr.mxu0 0.0
    %97 = vmatpush1.msra.mxu0 0.0
    %98 = vmatprep.subr.mxu0 0.0
    %99 = vmatpush1.msra.mxu0 0.0
    %100 = vmatprep.subr.mxu0 0.0
    %101 = vmatpush1.msra.mxu0 0.0
    %102 = vmatprep.subr.mxu0 0.0
    %103 = vmatpush1.msra.mxu0 %v65
    %104 = vmatprep.subr.mxu0 0.0
    %105 = vmatpush1.msra.mxu0 %v64
    %106 = vmatprep.subr.mxu0 0.0
    %107 = vmatpush1.msra.mxu0 %v63
    %108 = vmatprep.subr.mxu0 0.0
    %109 = vmatpush1.msra.mxu0 %v62
    %110 = vmatprep.subr.mxu0 0.0
    %111 = vmatpush2.msra.mxu0 0.0
    %112 = vmatprep.subr.mxu0 0.0
    %113 = vmatpush2.msra.mxu0 0.0
    %114 = vmatprep.subr.mxu0 0.0
    %115 = vmatpush2.msra.mxu0 0.0
    %116 = vmatprep.subr.mxu0 0.0
    %117 = vmatpush2.msra.mxu0 0.0
    %118 = vmatprep.subr.mxu0 0.0
    %119 = vmatpush2.msra.mxu0 0.0
    %120 = vmatprep.subr.mxu0 0.0
    %121 = vmatpush2.msra.mxu0 0.0
    %122 = vmatprep.subr.mxu0 0.0
    %123 = vmatpush2.msra.mxu0 0.0
    %124 = vmatprep.subr.mxu0 0.0
    %125 = vmatpush2.msra.mxu0 0.0
    %126 = vmatprep.subr.mxu0 0.0
    %127 = vmatpush2.msra.mxu0 0.0
    %128 = vmatprep.subr.mxu0 0.0
    %129 = vmatpush2.msra.mxu0 0.0
    %130 = vmatprep.subr.mxu0 0.0
    %131 = vmatpush2.msra.mxu0 0.0
    %132 = vmatprep.subr.mxu0 0.0
    %133 = vmatpush2.msra.mxu0 0.0
    %134 = vmatprep.subr.mxu0 0.0
    %135 = vmatpush2.msra.mxu0 0.0
    %136 = vmatprep.subr.mxu0 0.0
    %137 = vmatpush2.msra.mxu0 0.0
    %138 = vmatprep.subr.mxu0 0.0
    %139 = vmatpush2.msra.mxu0 0.0
    %140 = vmatprep.subr.mxu0 0.0
    %141 = vmatpush2.msra.mxu0 0.0
    %142 = vmatprep.mubr.f32.mxu0 0.0
    %143 = vmatmul.mubr.f32.gmra.mxu0 %v76
    %v144 = vpop.f32.mrf.mxu0
    %v145 = vadd.f32 %v72, %v144
    %v146 = vpop.f32.mrf.mxu0
    %147 = vdwg.mxu0
    %v148 = vld [vmem:[#allocation5] sm:$0xff]
    %v149 = vadd.f32 %v148, %v145
    %v150 = vxor.u32 %v149, 2147483648
    %v151 = vmul.f32 %v150, 1.442695
    %v152 = vpow.pop %v151
    %v153 = vadd.f32 %v152, 1.0
    %v154 = vrcp.pop %v153
    %v155 = vmul.f32 1.0, %v154
    %157 = vrot.lane.b32.xlu0 %v145, 96
    %v158 = vpop.permute.xlu0 %157
    %v160 = vmul.f32 %v155, %v158
    %162 = vrot.lane.b32.xlu0 %v160, 32
    %v163 = vpop.permute.xlu0 %162
    %v165 = vadd.f32 %v148, %v163
    %v166 = vtanh.pop %v165
    %v167 = vsub.f32 1.0, %v155
    %169 = vrot.lane.b32.xlu0 %v166, 112
    %v170 = vpop.permute.xlu0 %169
    %v172 = vmul.f32 %v167, %v170
    %v173 = vmul.f32 %v155, 0.0
    %v174 = vadd.f32 %v172, %v173
    %v175 = vld [vmem:[#allocation2] sm:$0xff]
    %176 = vrot.lane.b32.xlu0 %v145, 80
    %v177 = vpop.permute.xlu0 %176
    %v179 = vadd.f32 %v175, %v177
    %v180 = vxor.u32 %v179, 2147483648
    %v181 = vmul.f32 %v180, 1.442695
    %v182 = vpow.pop %v181
    %v183 = vadd.f32 %v182, 1.0
    %v184 = vrcp.pop %v183
    %v185 = vmul.f32 1.0, %v184
    %186 = vrot.lane.b32.xlu0 %v145, 48
    %v187 = vpop.permute.xlu0 %186
    %v189 = vmul.f32 %v185, %v187
    %191 = vrot.lane.b32.xlu0 %v189, 32
    %v192 = vpop.permute.xlu0 %191
    %v194 = vadd.f32 %v175, %v192
    %v195 = vtanh.pop %v194
    %v196 = vsub.f32 1.0, %v185
    %198 = vrot.lane.b32.xlu0 %v195, 112
    %v199 = vpop.permute.xlu0 %198
    %v201 = vmul.f32 %v196, %v199
    %v202 = vmul.f32 %v185, 0.0
    %v203 = vadd.f32 %v201, %v202
    %vm204 = vcmp.gt.s32.totalorder %v67, 7
    %v205 = vsel %vm204, 1, 0
    %206 = vset.pattern.permute.xlu0 0
    %207 = vperm.xlu0 %206, %v205
    %v208 = vpop.permute.xlu0 %207
    %vm209 = vcmp.eq.s32.totalorder %v208, 1
    %v210 = vsel %vm209, %v174, 0.0
    %vm211 = vcmp.gt.s32.totalorder %v67, 0
    %v212 = vsel %vm211, 1, 0
    %213 = vset.pattern.permute.xlu0 0
    %214 = vperm.xlu0 %213, %v212
    %v215 = vpop.permute.xlu0 %214
    %vm216 = vcmp.eq.s32.totalorder %v215, 1
    %v217 = vsel %vm216, %v203, 0.0
    %219 = vrot.lane.b32.xlu0 %v210, 112
    %v220 = vpop.permute.xlu0 %219
    %vm222 = vcmask 130048
    %v223 = vsel %vm222, %v220, %v217
    %v225 = vsel %vm74, %v223, 0
    %227 = vmatprep.subr.mxu0 0.0
    %228 = vmatpush1.msra.mxu0 0.0
    %229 = vmatprep.subr.mxu0 0.0
    %230 = vmatpush1.msra.mxu0 0.0
    %231 = vmatprep.subr.mxu0 0.0
    %232 = vmatpush1.msra.mxu0 0.0
    %233 = vmatprep.subr.mxu0 0.0
    %234 = vmatpush1.msra.mxu0 0.0
    %235 = vmatprep.subr.mxu0 0.0
    %236 = vmatpush1.msra.mxu0 0.0
    %237 = vmatprep.subr.mxu0 0.0
    %238 = vmatpush1.msra.mxu0 0.0
    %239 = vmatprep.subr.mxu0 0.0
    %240 = vmatpush1.msra.mxu0 0.0
    %241 = vmatprep.subr.mxu0 0.0
    %242 = vmatpush1.msra.mxu0 0.0
    %243 = vmatprep.subr.mxu0 0.0
    %244 = vmatpush1.msra.mxu0 0.0
    %245 = vmatprep.subr.mxu0 0.0
    %246 = vmatpush1.msra.mxu0 0.0
    %247 = vmatprep.subr.mxu0 0.0
    %248 = vmatpush1.msra.mxu0 0.0
    %249 = vmatprep.subr.mxu0 0.0
    %250 = vmatpush1.msra.mxu0 0.0
    %251 = vmatprep.subr.mxu0 0.0
    %252 = vmatpush1.msra.mxu0 %v65
    %253 = vmatprep.subr.mxu0 0.0
    %254 = vmatpush1.msra.mxu0 %v64
    %255 = vmatprep.subr.mxu0 0.0
    %256 = vmatpush1.msra.mxu0 %v63
    %257 = vmatprep.subr.mxu0 0.0
    %258 = vmatpush1.msra.mxu0 %v62
    %259 = vmatprep.subr.mxu0 0.0
    %260 = vmatpush2.msra.mxu0 0.0
    %261 = vmatprep.subr.mxu0 0.0
    %262 = vmatpush2.msra.mxu0 0.0
    %263 = vmatprep.subr.mxu0 0.0
    %264 = vmatpush2.msra.mxu0 0.0
    %265 = vmatprep.subr.mxu0 0.0
    %266 = vmatpush2.msra.mxu0 0.0
    %267 = vmatprep.subr.mxu0 0.0
    %268 = vmatpush2.msra.mxu0 0.0
    %269 = vmatprep.subr.mxu0 0.0
    %270 = vmatpush2.msra.mxu0 0.0
    %271 = vmatprep.subr.mxu0 0.0
    %272 = vmatpush2.msra.mxu0 0.0
    %273 = vmatprep.subr.mxu0 0.0
    %274 = vmatpush2.msra.mxu0 0.0
    %275 = vmatprep.subr.mxu0 0.0
    %276 = vmatpush2.msra.mxu0 0.0
    %277 = vmatprep.subr.mxu0 0.0
    %278 = vmatpush2.msra.mxu0 0.0
    %279 = vmatprep.subr.mxu0 0.0
    %280 = vmatpush2.msra.mxu0 0.0
    %281 = vmatprep.subr.mxu0 0.0
    %282 = vmatpush2.msra.mxu0 0.0
    %283 = vmatprep.subr.mxu0 0.0
    %284 = vmatpush2.msra.mxu0 0.0
    %285 = vmatprep.subr.mxu0 0.0
    %286 = vmatpush2.msra.mxu0 0.0
    %287 = vmatprep.subr.mxu0 0.0
    %288 = vmatpush2.msra.mxu0 0.0
    %289 = vmatprep.subr.mxu0 0.0
    %290 = vmatpush2.msra.mxu0 0.0
    %291 = vmatprep.mubr.f32.mxu0 0.0
    %292 = vmatmul.mubr.f32.gmra.mxu0 %v225
    %v293 = vpop.f32.mrf.mxu0
    %v294 = vadd.f32 %v72, %v293
    %v295 = vpop.f32.mrf.mxu0
    %296 = vdwg.mxu0
    %s297 = scalar_lea.vmem [#allocation5], 8
    %v298 = vld [vmem:[%s297] sm:$0xff]
    %v299 = vadd.f32 %v298, %v294
    %v300 = vxor.u32 %v299, 2147483648
    %v301 = vmul.f32 %v300, 1.442695
    %v302 = vpow.pop %v301
    %v303 = vadd.f32 %v302, 1.0
    %v304 = vrcp.pop %v303
    %v305 = vmul.f32 1.0, %v304
    %307 = vrot.lane.b32.xlu0 %v294, 96
    %v308 = vpop.permute.xlu0 %307
    %v310 = vmul.f32 %v305, %v308
    %312 = vrot.lane.b32.xlu0 %v310, 32
    %v313 = vpop.permute.xlu0 %312
    %v315 = vadd.f32 %v298, %v313
    %v316 = vtanh.pop %v315
    %v317 = vsub.f32 1.0, %v305
    %319 = vrot.lane.b32.xlu0 %v316, 112
    %v320 = vpop.permute.xlu0 %319
    %v322 = vmul.f32 %v317, %v320
    %323 = vrot.lane.b32.xlu0 %v223, 16
    %v324 = vpop.permute.xlu0 %323
    %v326 = vmul.f32 %v305, %v324
    %v327 = vadd.f32 %v322, %v326
    %s328 = scalar_lea.vmem [#allocation2], 8
    %v329 = vld [vmem:[%s328] sm:$0xff]
    %330 = vrot.lane.b32.xlu0 %v294, 80
    %v331 = vpop.permute.xlu0 %330
    %v333 = vadd.f32 %v329, %v331
    %v334 = vxor.u32 %v333, 2147483648
    %v335 = vmul.f32 %v334, 1.442695
    %v336 = vpow.pop %v335
    %v337 = vadd.f32 %v336, 1.0
    %v338 = vrcp.pop %v337
    %v339 = vmul.f32 1.0, %v338
    %340 = vrot.lane.b32.xlu0 %v294, 48
    %v341 = vpop.permute.xlu0 %340
    %v343 = vmul.f32 %v339, %v341
    %345 = vrot.lane.b32.xlu0 %v343, 32
    %v346 = vpop.permute.xlu0 %345
    %v348 = vadd.f32 %v329, %v346
    %v349 = vtanh.pop %v348
    %v350 = vsub.f32 1.0, %v339
    %352 = vrot.lane.b32.xlu0 %v349, 112
    %v353 = vpop.permute.xlu0 %352
    %v355 = vmul.f32 %v350, %v353
    %v356 = vmul.f32 %v339, %v223
    %v357 = vadd.f32 %v355, %v356
    %vm358 = vcmp.gt.s32.totalorder %v67, 6
    %v359 = vsel %vm358, 1, 0
    %360 = vset.pattern.permute.xlu0 0
    %361 = vperm.xlu0 %360, %v359
    %v362 = vpop.permute.xlu0 %361
    %vm363 = vcmp.eq.s32.totalorder %v362, 1
    %v364 = vsel %vm363, %v327, %v324
    %vm365 = vcmp.gt.s32.totalorder %v67, 1
    %v366 = vsel %vm365, 1, 0
    %367 = vset.pattern.permute.xlu0 0
    %368 = vperm.xlu0 %367, %v366
    %v369 = vpop.permute.xlu0 %368
    %vm370 = vcmp.eq.s32.totalorder %v369, 1
    %v371 = vsel %vm370, %v357, %v223
    %373 = vrot.lane.b32.xlu0 %v364, 112
    %v374 = vpop.permute.xlu0 %373
    %v376 = vsel %vm222, %v374, %v371
    %v378 = vsel %vm74, %v376, 0
    %380 = vmatprep.subr.mxu0 0.0
    %381 = vmatpush1.msra.mxu0 0.0
    %382 = vmatprep.subr.mxu0 0.0
    %383 = vmatpush1.msra.mxu0 0.0
    %384 = vmatprep.subr.mxu0 0.0
    %385 = vmatpush1.msra.mxu0 0.0
    %386 = vmatprep.subr.mxu0 0.0
    %387 = vmatpush1.msra.mxu0 0.0
    %388 = vmatprep.subr.mxu0 0.0
    %389 = vmatpush1.msra.mxu0 0.0
    %390 = vmatprep.subr.mxu0 0.0
    %391 = vmatpush1.msra.mxu0 0.0
    %392 = vmatprep.subr.mxu0 0.0
    %393 = vmatpush1.msra.mxu0 0.0
    %394 = vmatprep.subr.mxu0 0.0
    %395 = vmatpush1.msra.mxu0 0.0
    %396 = vmatprep.subr.mxu0 0.0
    %397 = vmatpush1.msra.mxu0 0.0
    %398 = vmatprep.subr.mxu0 0.0
    %399 = vmatpush1.msra.mxu0 0.0
    %400 = vmatprep.subr.mxu0 0.0
    %401 = vmatpush1.msra.mxu0 0.0
    %402 = vmatprep.subr.mxu0 0.0
    %403 = vmatpush1.msra.mxu0 0.0
    %404 = vmatprep.subr.mxu0 0.0
    %405 = vmatpush1.msra.mxu0 %v65
    %406 = vmatprep.subr.mxu0 0.0
    %407 = vmatpush1.msra.mxu0 %v64
    %408 = vmatprep.subr.mxu0 0.0
    %409 = vmatpush1.msra.mxu0 %v63
    %410 = vmatprep.subr.mxu0 0.0
    %411 = vmatpush1.msra.mxu0 %v62
    %412 = vmatprep.subr.mxu0 0.0
    %413 = vmatpush2.msra.mxu0 0.0
    %414 = vmatprep.subr.mxu0 0.0
    %415 = vmatpush2.msra.mxu0 0.0
    %416 = vmatprep.subr.mxu0 0.0
    %417 = vmatpush2.msra.mxu0 0.0
    %418 = vmatprep.subr.mxu0 0.0
    %419 = vmatpush2.msra.mxu0 0.0
    %420 = vmatprep.subr.mxu0 0.0
    %421 = vmatpush2.msra.mxu0 0.0
    %422 = vmatprep.subr.mxu0 0.0
    %423 = vmatpush2.msra.mxu0 0.0
    %424 = vmatprep.subr.mxu0 0.0
    %425 = vmatpush2.msra.mxu0 0.0
    %426 = vmatprep.subr.mxu0 0.0
    %427 = vmatpush2.msra.mxu0 0.0
    %428 = vmatprep.subr.mxu0 0.0
    %429 = vmatpush2.msra.mxu0 0.0
    %430 = vmatprep.subr.mxu0 0.0
    %431 = vmatpush2.msra.mxu0 0.0
    %432 = vmatprep.subr.mxu0 0.0
    %433 = vmatpush2.msra.mxu0 0.0
    %434 = vmatprep.subr.mxu0 0.0
    %435 = vmatpush2.msra.mxu0 0.0
    %436 = vmatprep.subr.mxu0 0.0
    %437 = vmatpush2.msra.mxu0 0.0
    %438 = vmatprep.subr.mxu0 0.0
    %439 = vmatpush2.msra.mxu0 0.0
    %440 = vmatprep.subr.mxu0 0.0
    %441 = vmatpush2.msra.mxu0 0.0
    %442 = vmatprep.subr.mxu0 0.0
    %443 = vmatpush2.msra.mxu0 0.0
    %444 = vmatprep.mubr.f32.mxu0 0.0
    %445 = vmatmul.mubr.f32.gmra.mxu0 %v378
    %v446 = vpop.f32.mrf.mxu0
    %v447 = vadd.f32 %v72, %v446
    %v448 = vpop.f32.mrf.mxu0
    %449 = vdwg.mxu0
    %s450 = scalar_lea.vmem [#allocation5], 16
    %v451 = vld [vmem:[%s450] sm:$0xff]
    %v452 = vadd.f32 %v451, %v447
    %v453 = vxor.u32 %v452, 2147483648
    %v454 = vmul.f32 %v453, 1.442695
    %v455 = vpow.pop %v454
    %v456 = vadd.f32 %v455, 1.0
    %v457 = vrcp.pop %v456
    %v458 = vmul.f32 1.0, %v457
    %460 = vrot.lane.b32.xlu0 %v447, 96
    %v461 = vpop.permute.xlu0 %460
    %v463 = vmul.f32 %v458, %v461
    %465 = vrot.lane.b32.xlu0 %v463, 32
    %v466 = vpop.permute.xlu0 %465
    %v468 = vadd.f32 %v451, %v466
    %v469 = vtanh.pop %v468
    %v470 = vsub.f32 1.0, %v458
    %472 = vrot.lane.b32.xlu0 %v469, 112
    %v473 = vpop.permute.xlu0 %472
    %v475 = vmul.f32 %v470, %v473
    %476 = vrot.lane.b32.xlu0 %v376, 16
    %v477 = vpop.permute.xlu0 %476
    %v479 = vmul.f32 %v458, %v477
    %v480 = vadd.f32 %v475, %v479
    %s481 = scalar_lea.vmem [#allocation2], 16
    %v482 = vld [vmem:[%s481] sm:$0xff]
    %483 = vrot.lane.b32.xlu0 %v447, 80
    %v484 = vpop.permute.xlu0 %483
    %v486 = vadd.f32 %v482, %v484
    %v487 = vxor.u32 %v486, 2147483648
    %v488 = vmul.f32 %v487, 1.442695
    %v489 = vpow.pop %v488
    %v490 = vadd.f32 %v489, 1.0
    %v491 = vrcp.pop %v490
    %v492 = vmul.f32 1.0, %v491
    %493 = vrot.lane.b32.xlu0 %v447, 48
    %v494 = vpop.permute.xlu0 %493
    %v496 = vmul.f32 %v492, %v494
    %498 = vrot.lane.b32.xlu0 %v496, 32
    %v499 = vpop.permute.xlu0 %498
    %v501 = vadd.f32 %v482, %v499
    %v502 = vtanh.pop %v501
    %v503 = vsub.f32 1.0, %v492
    %505 = vrot.lane.b32.xlu0 %v502, 112
    %v506 = vpop.permute.xlu0 %505
    %v508 = vmul.f32 %v503, %v506
    %v509 = vmul.f32 %v492, %v376
    %v510 = vadd.f32 %v508, %v509
    %vm511 = vcmp.gt.s32.totalorder %v67, 5
    %v512 = vsel %vm511, 1, 0
    %513 = vset.pattern.permute.xlu0 0
    %514 = vperm.xlu0 %513, %v512
    %v515 = vpop.permute.xlu0 %514
    %vm516 = vcmp.eq.s32.totalorder %v515, 1
    %v517 = vsel %vm516, %v480, %v477
    %vm518 = vcmp.gt.s32.totalorder %v67, 2
    %v519 = vsel %vm518, 1, 0
    %520 = vset.pattern.permute.xlu0 0
    %521 = vperm.xlu0 %520, %v519
    %v522 = vpop.permute.xlu0 %521
    %vm523 = vcmp.eq.s32.totalorder %v522, 1
    %v524 = vsel %vm523, %v510, %v376
    %526 = vrot.lane.b32.xlu0 %v517, 112
    %v527 = vpop.permute.xlu0 %526
    %v529 = vsel %vm222, %v527, %v524
    %v531 = vsel %vm74, %v529, 0
    %533 = vmatprep.subr.mxu0 0.0
    %534 = vmatpush1.msra.mxu0 0.0
    %535 = vmatprep.subr.mxu0 0.0
    %536 = vmatpush1.msra.mxu0 0.0
    %537 = vmatprep.subr.mxu0 0.0
    %538 = vmatpush1.msra.mxu0 0.0
    %539 = vmatprep.subr.mxu0 0.0
    %540 = vmatpush1.msra.mxu0 0.0
    %541 = vmatprep.subr.mxu0 0.0
    %542 = vmatpush1.msra.mxu0 0.0
    %543 = vmatprep.subr.mxu0 0.0
    %544 = vmatpush1.msra.mxu0 0.0
    %545 = vmatprep.subr.mxu0 0.0
    %546 = vmatpush1.msra.mxu0 0.0
    %547 = vmatprep.subr.mxu0 0.0
    %548 = vmatpush1.msra.mxu0 0.0
    %549 = vmatprep.subr.mxu0 0.0
    %550 = vmatpush1.msra.mxu0 0.0
    %551 = vmatprep.subr.mxu0 0.0
    %552 = vmatpush1.msra.mxu0 0.0
    %553 = vmatprep.subr.mxu0 0.0
    %554 = vmatpush1.msra.mxu0 0.0
    %555 = vmatprep.subr.mxu0 0.0
    %556 = vmatpush1.msra.mxu0 0.0
    %557 = vmatprep.subr.mxu0 0.0
    %558 = vmatpush1.msra.mxu0 %v65
    %559 = vmatprep.subr.mxu0 0.0
    %560 = vmatpush1.msra.mxu0 %v64
    %561 = vmatprep.subr.mxu0 0.0
    %562 = vmatpush1.msra.mxu0 %v63
    %563 = vmatprep.subr.mxu0 0.0
    %564 = vmatpush1.msra.mxu0 %v62
    %565 = vmatprep.subr.mxu0 0.0
    %566 = vmatpush2.msra.mxu0 0.0
    %567 = vmatprep.subr.mxu0 0.0
    %568 = vmatpush2.msra.mxu0 0.0
    %569 = vmatprep.subr.mxu0 0.0
    %570 = vmatpush2.msra.mxu0 0.0
    %571 = vmatprep.subr.mxu0 0.0
    %572 = vmatpush2.msra.mxu0 0.0
    %573 = vmatprep.subr.mxu0 0.0
    %574 = vmatpush2.msra.mxu0 0.0
    %575 = vmatprep.subr.mxu0 0.0
    %576 = vmatpush2.msra.mxu0 0.0
    %577 = vmatprep.subr.mxu0 0.0
    %578 = vmatpush2.msra.mxu0 0.0
    %579 = vmatprep.subr.mxu0 0.0
    %580 = vmatpush2.msra.mxu0 0.0
    %581 = vmatprep.subr.mxu0 0.0
    %582 = vmatpush2.msra.mxu0 0.0
    %583 = vmatprep.subr.mxu0 0.0
    %584 = vmatpush2.msra.mxu0 0.0
    %585 = vmatprep.subr.mxu0 0.0
    %586 = vmatpush2.msra.mxu0 0.0
    %587 = vmatprep.subr.mxu0 0.0
    %588 = vmatpush2.msra.mxu0 0.0
    %589 = vmatprep.subr.mxu0 0.0
    %590 = vmatpush2.msra.mxu0 0.0
    %591 = vmatprep.subr.mxu0 0.0
    %592 = vmatpush2.msra.mxu0 0.0
    %593 = vmatprep.subr.mxu0 0.0
    %594 = vmatpush2.msra.mxu0 0.0
    %595 = vmatprep.subr.mxu0 0.0
    %596 = vmatpush2.msra.mxu0 0.0
    %597 = vmatprep.mubr.f32.mxu0 0.0
    %598 = vmatmul.mubr.f32.gmra.mxu0 %v531
    %v599 = vpop.f32.mrf.mxu0
    %v600 = vadd.f32 %v72, %v599
    %v601 = vpop.f32.mrf.mxu0
    %602 = vdwg.mxu0
    %s603 = scalar_lea.vmem [#allocation5], 24
    %v604 = vld [vmem:[%s603] sm:$0xff]
    %v605 = vadd.f32 %v604, %v600
    %v606 = vxor.u32 %v605, 2147483648
    %v607 = vmul.f32 %v606, 1.442695
    %v608 = vpow.pop %v607
    %v609 = vadd.f32 %v608, 1.0
    %v610 = vrcp.pop %v609
    %v611 = vmul.f32 1.0, %v610
    %613 = vrot.lane.b32.xlu0 %v600, 96
    %v614 = vpop.permute.xlu0 %613
    %v616 = vmul.f32 %v611, %v614
    %618 = vrot.lane.b32.xlu0 %v616, 32
    %v619 = vpop.permute.xlu0 %618
    %v621 = vadd.f32 %v604, %v619
    %v622 = vtanh.pop %v621
    %v623 = vsub.f32 1.0, %v611
    %625 = vrot.lane.b32.xlu0 %v622, 112
    %v626 = vpop.permute.xlu0 %625
    %v628 = vmul.f32 %v623, %v626
    %629 = vrot.lane.b32.xlu0 %v529, 16
    %v630 = vpop.permute.xlu0 %629
    %v632 = vmul.f32 %v611, %v630
    %v633 = vadd.f32 %v628, %v632
    %s634 = scalar_lea.vmem [#allocation2], 24
    %v635 = vld [vmem:[%s634] sm:$0xff]
    %636 = vrot.lane.b32.xlu0 %v600, 80
    %v637 = vpop.permute.xlu0 %636
    %v639 = vadd.f32 %v635, %v637
    %v640 = vxor.u32 %v639, 2147483648
    %v641 = vmul.f32 %v640, 1.442695
    %v642 = vpow.pop %v641
    %v643 = vadd.f32 %v642, 1.0
    %v644 = vrcp.pop %v643
    %v645 = vmul.f32 1.0, %v644
    %646 = vrot.lane.b32.xlu0 %v600, 48
    %v647 = vpop.permute.xlu0 %646
    %v649 = vmul.f32 %v645, %v647
    %651 = vrot.lane.b32.xlu0 %v649, 32
    %v652 = vpop.permute.xlu0 %651
    %v654 = vadd.f32 %v635, %v652
    %v655 = vtanh.pop %v654
    %v656 = vsub.f32 1.0, %v645
    %658 = vrot.lane.b32.xlu0 %v655, 112
    %v659 = vpop.permute.xlu0 %658
    %v661 = vmul.f32 %v656, %v659
    %v662 = vmul.f32 %v645, %v529
    %v663 = vadd.f32 %v661, %v662
    %vm664 = vcmp.gt.s32.totalorder %v67, 4
    %v665 = vsel %vm664, 1, 0
    %666 = vset.pattern.permute.xlu0 0
    %667 = vperm.xlu0 %666, %v665
    %v668 = vpop.permute.xlu0 %667
    %vm669 = vcmp.eq.s32.totalorder %v668, 1
    %v670 = vsel %vm669, %v633, %v630
    %vm671 = vcmp.gt.s32.totalorder %v67, 3
    %v672 = vsel %vm671, 1, 0
    %673 = vset.pattern.permute.xlu0 0
    %674 = vperm.xlu0 %673, %v672
    %v675 = vpop.permute.xlu0 %674
    %vm676 = vcmp.eq.s32.totalorder %v675, 1
    %v677 = vsel %vm676, %v663, %v529
    %679 = vrot.lane.b32.xlu0 %v670, 112
    %v680 = vpop.permute.xlu0 %679
    %v682 = vsel %vm222, %v680, %v677
    %v684 = vsel %vm74, %v682, 0
    %686 = vmatprep.subr.mxu0 0.0
    %687 = vmatpush1.msra.mxu0 0.0
    %688 = vmatprep.subr.mxu0 0.0
    %689 = vmatpush1.msra.mxu0 0.0
    %690 = vmatprep.subr.mxu0 0.0
    %691 = vmatpush1.msra.mxu0 0.0
    %692 = vmatprep.subr.mxu0 0.0
    %693 = vmatpush1.msra.mxu0 0.0
    %694 = vmatprep.subr.mxu0 0.0
    %695 = vmatpush1.msra.mxu0 0.0
    %696 = vmatprep.subr.mxu0 0.0
    %697 = vmatpush1.msra.mxu0 0.0
    %698 = vmatprep.subr.mxu0 0.0
    %699 = vmatpush1.msra.mxu0 0.0
    %700 = vmatprep.subr.mxu0 0.0
    %701 = vmatpush1.msra.mxu0 0.0
    %702 = vmatprep.subr.mxu0 0.0
    %703 = vmatpush1.msra.mxu0 0.0
    %704 = vmatprep.subr.mxu0 0.0
    %705 = vmatpush1.msra.mxu0 0.0
    %706 = vmatprep.subr.mxu0 0.0
    %707 = vmatpush1.msra.mxu0 0.0
    %708 = vmatprep.subr.mxu0 0.0
    %709 = vmatpush1.msra.mxu0 0.0
    %710 = vmatprep.subr.mxu0 0.0
    %711 = vmatpush1.msra.mxu0 %v65
    %712 = vmatprep.subr.mxu0 0.0
    %713 = vmatpush1.msra.mxu0 %v64
    %714 = vmatprep.subr.mxu0 0.0
    %715 = vmatpush1.msra.mxu0 %v63
    %716 = vmatprep.subr.mxu0 0.0
    %717 = vmatpush1.msra.mxu0 %v62
    %718 = vmatprep.subr.mxu0 0.0
    %719 = vmatpush2.msra.mxu0 0.0
    %720 = vmatprep.subr.mxu0 0.0
    %721 = vmatpush2.msra.mxu0 0.0
    %722 = vmatprep.subr.mxu0 0.0
    %723 = vmatpush2.msra.mxu0 0.0
    %724 = vmatprep.subr.mxu0 0.0
    %725 = vmatpush2.msra.mxu0 0.0
    %726 = vmatprep.subr.mxu0 0.0
    %727 = vmatpush2.msra.mxu0 0.0
    %728 = vmatprep.subr.mxu0 0.0
    %729 = vmatpush2.msra.mxu0 0.0
    %730 = vmatprep.subr.mxu0 0.0
    %731 = vmatpush2.msra.mxu0 0.0
    %732 = vmatprep.subr.mxu0 0.0
    %733 = vmatpush2.msra.mxu0 0.0
    %734 = vmatprep.subr.mxu0 0.0
    %735 = vmatpush2.msra.mxu0 0.0
    %736 = vmatprep.subr.mxu0 0.0
    %737 = vmatpush2.msra.mxu0 0.0
    %738 = vmatprep.subr.mxu0 0.0
    %739 = vmatpush2.msra.mxu0 0.0
    %740 = vmatprep.subr.mxu0 0.0
    %741 = vmatpush2.msra.mxu0 0.0
    %742 = vmatprep.subr.mxu0 0.0
    %743 = vmatpush2.msra.mxu0 0.0
    %744 = vmatprep.subr.mxu0 0.0
    %745 = vmatpush2.msra.mxu0 0.0
    %746 = vmatprep.subr.mxu0 0.0
    %747 = vmatpush2.msra.mxu0 0.0
    %748 = vmatprep.subr.mxu0 0.0
    %749 = vmatpush2.msra.mxu0 0.0
    %750 = vmatprep.mubr.f32.mxu0 0.0
    %751 = vmatmul.mubr.f32.gmra.mxu0 %v684
    %v752 = vpop.f32.mrf.mxu0
    %v753 = vadd.f32 %v72, %v752
    %v754 = vpop.f32.mrf.mxu0
    %755 = vdwg.mxu0
    %s756 = scalar_lea.vmem [#allocation5], 32
    %v757 = vld [vmem:[%s756] sm:$0xff]
    %v758 = vadd.f32 %v757, %v753
    %v759 = vxor.u32 %v758, 2147483648
    %v760 = vmul.f32 %v759, 1.442695
    %v761 = vpow.pop %v760
    %v762 = vadd.f32 %v761, 1.0
    %v763 = vrcp.pop %v762
    %v764 = vmul.f32 1.0, %v763
    %766 = vrot.lane.b32.xlu0 %v753, 96
    %v767 = vpop.permute.xlu0 %766
    %v769 = vmul.f32 %v764, %v767
    %771 = vrot.lane.b32.xlu0 %v769, 32
    %v772 = vpop.permute.xlu0 %771
    %v774 = vadd.f32 %v757, %v772
    %v775 = vtanh.pop %v774
    %v776 = vsub.f32 1.0, %v764
    %778 = vrot.lane.b32.xlu0 %v775, 112
    %v779 = vpop.permute.xlu0 %778
    %v781 = vmul.f32 %v776, %v779
    %782 = vrot.lane.b32.xlu0 %v682, 16
    %v783 = vpop.permute.xlu0 %782
    %v785 = vmul.f32 %v764, %v783
    %v786 = vadd.f32 %v781, %v785
    %s787 = scalar_lea.vmem [#allocation2], 32
    %v788 = vld [vmem:[%s787] sm:$0xff]
    %789 = vrot.lane.b32.xlu0 %v753, 80
    %v790 = vpop.permute.xlu0 %789
    %v792 = vadd.f32 %v788, %v790
    %v793 = vxor.u32 %v792, 2147483648
    %v794 = vmul.f32 %v793, 1.442695
    %v795 = vpow.pop %v794
    %v796 = vadd.f32 %v795, 1.0
    %v797 = vrcp.pop %v796
    %v798 = vmul.f32 1.0, %v797
    %799 = vrot.lane.b32.xlu0 %v753, 48
    %v800 = vpop.permute.xlu0 %799
    %v802 = vmul.f32 %v798, %v800
    %804 = vrot.lane.b32.xlu0 %v802, 32
    %v805 = vpop.permute.xlu0 %804
    %v807 = vadd.f32 %v788, %v805
    %v808 = vtanh.pop %v807
    %v809 = vsub.f32 1.0, %v798
    %811 = vrot.lane.b32.xlu0 %v808, 112
    %v812 = vpop.permute.xlu0 %811
    %v814 = vmul.f32 %v809, %v812
    %v815 = vmul.f32 %v798, %v682
    %v816 = vadd.f32 %v814, %v815
    %v817 = vsel %vm676, %v786, %v783
    %v818 = vsel %vm669, %v816, %v682
    %820 = vrot.lane.b32.xlu0 %v817, 112
    %v821 = vpop.permute.xlu0 %820
    %v823 = vsel %vm222, %v821, %v818
    %v825 = vsel %vm74, %v823, 0
    %827 = vmatprep.subr.mxu0 0.0
    %828 = vmatpush1.msra.mxu0 0.0
    %829 = vmatprep.subr.mxu0 0.0
    %830 = vmatpush1.msra.mxu0 0.0
    %831 = vmatprep.subr.mxu0 0.0
    %832 = vmatpush1.msra.mxu0 0.0
    %833 = vmatprep.subr.mxu0 0.0
    %834 = vmatpush1.msra.mxu0 0.0
    %835 = vmatprep.subr.mxu0 0.0
    %836 = vmatpush1.msra.mxu0 0.0
    %837 = vmatprep.subr.mxu0 0.0
    %838 = vmatpush1.msra.mxu0 0.0
    %839 = vmatprep.subr.mxu0 0.0
    %840 = vmatpush1.msra.mxu0 0.0
    %841 = vmatprep.subr.mxu0 0.0
    %842 = vmatpush1.msra.mxu0 0.0
    %843 = vmatprep.subr.mxu0 0.0
    %844 = vmatpush1.msra.mxu0 0.0
    %845 = vmatprep.subr.mxu0 0.0
    %846 = vmatpush1.msra.mxu0 0.0
    %847 = vmatprep.subr.mxu0 0.0
    %848 = vmatpush1.msra.mxu0 0.0
    %849 = vmatprep.subr.mxu0 0.0
    %850 = vmatpush1.msra.mxu0 0.0
    %851 = vmatprep.subr.mxu0 0.0
    %852 = vmatpush1.msra.mxu0 %v65
    %853 = vmatprep.subr.mxu0 0.0
    %854 = vmatpush1.msra.mxu0 %v64
    %855 = vmatprep.subr.mxu0 0.0
    %856 = vmatpush1.msra.mxu0 %v63
    %857 = vmatprep.subr.mxu0 0.0
    %858 = vmatpush1.msra.mxu0 %v62
    %859 = vmatprep.subr.mxu0 0.0
    %860 = vmatpush2.msra.mxu0 0.0
    %861 = vmatprep.subr.mxu0 0.0
    %862 = vmatpush2.msra.mxu0 0.0
    %863 = vmatprep.subr.mxu0 0.0
    %864 = vmatpush2.msra.mxu0 0.0
    %865 = vmatprep.subr.mxu0 0.0
    %866 = vmatpush2.msra.mxu0 0.0
    %867 = vmatprep.subr.mxu0 0.0
    %868 = vmatpush2.msra.mxu0 0.0
    %869 = vmatprep.subr.mxu0 0.0
    %870 = vmatpush2.msra.mxu0 0.0
    %871 = vmatprep.subr.mxu0 0.0
    %872 = vmatpush2.msra.mxu0 0.0
    %873 = vmatprep.subr.mxu0 0.0
    %874 = vmatpush2.msra.mxu0 0.0
    %875 = vmatprep.subr.mxu0 0.0
    %876 = vmatpush2.msra.mxu0 0.0
    %877 = vmatprep.subr.mxu0 0.0
    %878 = vmatpush2.msra.mxu0 0.0
    %879 = vmatprep.subr.mxu0 0.0
    %880 = vmatpush2.msra.mxu0 0.0
    %881 = vmatprep.subr.mxu0 0.0
    %882 = vmatpush2.msra.mxu0 0.0
    %883 = vmatprep.subr.mxu0 0.0
    %884 = vmatpush2.msra.mxu0 0.0
    %885 = vmatprep.subr.mxu0 0.0
    %886 = vmatpush2.msra.mxu0 0.0
    %887 = vmatprep.subr.mxu0 0.0
    %888 = vmatpush2.msra.mxu0 0.0
    %889 = vmatprep.subr.mxu0 0.0
    %890 = vmatpush2.msra.mxu0 0.0
    %891 = vmatprep.mubr.f32.mxu0 0.0
    %892 = vmatmul.mubr.f32.gmra.mxu0 %v825
    %v893 = vpop.f32.mrf.mxu0
    %v894 = vadd.f32 %v72, %v893
    %v895 = vpop.f32.mrf.mxu0
    %896 = vdwg.mxu0
    %s897 = scalar_lea.vmem [#allocation5], 40
    %v898 = vld [vmem:[%s897] sm:$0xff]
    %v899 = vadd.f32 %v898, %v894
    %v900 = vxor.u32 %v899, 2147483648
    %v901 = vmul.f32 %v900, 1.442695
    %v902 = vpow.pop %v901
    %v903 = vadd.f32 %v902, 1.0
    %v904 = vrcp.pop %v903
    %v905 = vmul.f32 1.0, %v904
    %907 = vrot.lane.b32.xlu0 %v894, 96
    %v908 = vpop.permute.xlu0 %907
    %v910 = vmul.f32 %v905, %v908
    %912 = vrot.lane.b32.xlu0 %v910, 32
    %v913 = vpop.permute.xlu0 %912
    %v915 = vadd.f32 %v898, %v913
    %v916 = vtanh.pop %v915
    %v917 = vsub.f32 1.0, %v905
    %919 = vrot.lane.b32.xlu0 %v916, 112
    %v920 = vpop.permute.xlu0 %919
    %v922 = vmul.f32 %v917, %v920
    %923 = vrot.lane.b32.xlu0 %v823, 16
    %v924 = vpop.permute.xlu0 %923
    %v926 = vmul.f32 %v905, %v924
    %v927 = vadd.f32 %v922, %v926
    %s928 = scalar_lea.vmem [#allocation2], 40
    %v929 = vld [vmem:[%s928] sm:$0xff]
    %930 = vrot.lane.b32.xlu0 %v894, 80
    %v931 = vpop.permute.xlu0 %930
    %v933 = vadd.f32 %v929, %v931
    %v934 = vxor.u32 %v933, 2147483648
    %v935 = vmul.f32 %v934, 1.442695
    %v936 = vpow.pop %v935
    %v937 = vadd.f32 %v936, 1.0
    %v938 = vrcp.pop %v937
    %v939 = vmul.f32 1.0, %v938
    %940 = vrot.lane.b32.xlu0 %v894, 48
    %v941 = vpop.permute.xlu0 %940
    %v943 = vmul.f32 %v939, %v941
    %945 = vrot.lane.b32.xlu0 %v943, 32
    %v946 = vpop.permute.xlu0 %945
    %v948 = vadd.f32 %v929, %v946
    %v949 = vtanh.pop %v948
    %v950 = vsub.f32 1.0, %v939
    %952 = vrot.lane.b32.xlu0 %v949, 112
    %v953 = vpop.permute.xlu0 %952
    %v955 = vmul.f32 %v950, %v953
    %v956 = vmul.f32 %v939, %v823
    %v957 = vadd.f32 %v955, %v956
    %v958 = vsel %vm523, %v927, %v924
    %v959 = vsel %vm516, %v957, %v823
    %961 = vrot.lane.b32.xlu0 %v958, 112
    %v962 = vpop.permute.xlu0 %961
    %v964 = vsel %vm222, %v962, %v959
    %v966 = vsel %vm74, %v964, 0
    %968 = vmatprep.subr.mxu0 0.0
    %969 = vmatpush1.msra.mxu0 0.0
    %970 = vmatprep.subr.mxu0 0.0
    %971 = vmatpush1.msra.mxu0 0.0
    %972 = vmatprep.subr.mxu0 0.0
    %973 = vmatpush1.msra.mxu0 0.0
    %974 = vmatprep.subr.mxu0 0.0
    %975 = vmatpush1.msra.mxu0 0.0
    %976 = vmatprep.subr.mxu0 0.0
    %977 = vmatpush1.msra.mxu0 0.0
    %978 = vmatprep.subr.mxu0 0.0
    %979 = vmatpush1.msra.mxu0 0.0
    %980 = vmatprep.subr.mxu0 0.0
    %981 = vmatpush1.msra.mxu0 0.0
    %982 = vmatprep.subr.mxu0 0.0
    %983 = vmatpush1.msra.mxu0 0.0
    %984 = vmatprep.subr.mxu0 0.0
    %985 = vmatpush1.msra.mxu0 0.0
    %986 = vmatprep.subr.mxu0 0.0
    %987 = vmatpush1.msra.mxu0 0.0
    %988 = vmatprep.subr.mxu0 0.0
    %989 = vmatpush1.msra.mxu0 0.0
    %990 = vmatprep.subr.mxu0 0.0
    %991 = vmatpush1.msra.mxu0 0.0
    %992 = vmatprep.subr.mxu0 0.0
    %993 = vmatpush1.msra.mxu0 %v65
    %994 = vmatprep.subr.mxu0 0.0
    %995 = vmatpush1.msra.mxu0 %v64
    %996 = vmatprep.subr.mxu0 0.0
    %997 = vmatpush1.msra.mxu0 %v63
    %998 = vmatprep.subr.mxu0 0.0
    %999 = vmatpush1.msra.mxu0 %v62
    %1000 = vmatprep.subr.mxu0 0.0
    %1001 = vmatpush2.msra.mxu0 0.0
    %1002 = vmatprep.subr.mxu0 0.0
    %1003 = vmatpush2.msra.mxu0 0.0
    %1004 = vmatprep.subr.mxu0 0.0
    %1005 = vmatpush2.msra.mxu0 0.0
    %1006 = vmatprep.subr.mxu0 0.0
    %1007 = vmatpush2.msra.mxu0 0.0
    %1008 = vmatprep.subr.mxu0 0.0
    %1009 = vmatpush2.msra.mxu0 0.0
    %1010 = vmatprep.subr.mxu0 0.0
    %1011 = vmatpush2.msra.mxu0 0.0
    %1012 = vmatprep.subr.mxu0 0.0
    %1013 = vmatpush2.msra.mxu0 0.0
    %1014 = vmatprep.subr.mxu0 0.0
    %1015 = vmatpush2.msra.mxu0 0.0
    %1016 = vmatprep.subr.mxu0 0.0
    %1017 = vmatpush2.msra.mxu0 0.0
    %1018 = vmatprep.subr.mxu0 0.0
    %1019 = vmatpush2.msra.mxu0 0.0
    %1020 = vmatprep.subr.mxu0 0.0
    %1021 = vmatpush2.msra.mxu0 0.0
    %1022 = vmatprep.subr.mxu0 0.0
    %1023 = vmatpush2.msra.mxu0 0.0
    %1024 = vmatprep.subr.mxu0 0.0
    %1025 = vmatpush2.msra.mxu0 0.0
    %1026 = vmatprep.subr.mxu0 0.0
    %1027 = vmatpush2.msra.mxu0 0.0
    %1028 = vmatprep.subr.mxu0 0.0
    %1029 = vmatpush2.msra.mxu0 0.0
    %1030 = vmatprep.subr.mxu0 0.0
    %1031 = vmatpush2.msra.mxu0 0.0
    %1032 = vmatprep.mubr.f32.mxu0 0.0
    %1033 = vmatmul.mubr.f32.gmra.mxu0 %v966
    %v1034 = vpop.f32.mrf.mxu0
    %v1035 = vadd.f32 %v72, %v1034
    %v1036 = vpop.f32.mrf.mxu0
    %1037 = vdwg.mxu0
    %s1038 = scalar_lea.vmem [#allocation5], 48
    %v1039 = vld [vmem:[%s1038] sm:$0xff]
    %v1040 = vadd.f32 %v1039, %v1035
    %v1041 = vxor.u32 %v1040, 2147483648
    %v1042 = vmul.f32 %v1041, 1.442695
    %v1043 = vpow.pop %v1042
    %v1044 = vadd.f32 %v1043, 1.0
    %v1045 = vrcp.pop %v1044
    %v1046 = vmul.f32 1.0, %v1045
    %1048 = vrot.lane.b32.xlu0 %v1035, 96
    %v1049 = vpop.permute.xlu0 %1048
    %v1051 = vmul.f32 %v1046, %v1049
    %1053 = vrot.lane.b32.xlu0 %v1051, 32
    %v1054 = vpop.permute.xlu0 %1053
    %v1056 = vadd.f32 %v1039, %v1054
    %v1057 = vtanh.pop %v1056
    %v1058 = vsub.f32 1.0, %v1046
    %1060 = vrot.lane.b32.xlu0 %v1057, 112
    %v1061 = vpop.permute.xlu0 %1060
    %v1063 = vmul.f32 %v1058, %v1061
    %1064 = vrot.lane.b32.xlu0 %v964, 16
    %v1065 = vpop.permute.xlu0 %1064
    %v1067 = vmul.f32 %v1046, %v1065
    %v1068 = vadd.f32 %v1063, %v1067
    %s1069 = scalar_lea.vmem [#allocation2], 48
    %v1070 = vld [vmem:[%s1069] sm:$0xff]
    %1071 = vrot.lane.b32.xlu0 %v1035, 80
    %v1072 = vpop.permute.xlu0 %1071
    %v1074 = vadd.f32 %v1070, %v1072
    %v1075 = vxor.u32 %v1074, 2147483648
    %v1076 = vmul.f32 %v1075, 1.442695
    %v1077 = vpow.pop %v1076
    %v1078 = vadd.f32 %v1077, 1.0
    %v1079 = vrcp.pop %v1078
    %v1080 = vmul.f32 1.0, %v1079
    %1081 = vrot.lane.b32.xlu0 %v1035, 48
    %v1082 = vpop.permute.xlu0 %1081
    %v1084 = vmul.f32 %v1080, %v1082
    %1086 = vrot.lane.b32.xlu0 %v1084, 32
    %v1087 = vpop.permute.xlu0 %1086
    %v1089 = vadd.f32 %v1070, %v1087
    %v1090 = vtanh.pop %v1089
    %v1091 = vsub.f32 1.0, %v1080
    %1093 = vrot.lane.b32.xlu0 %v1090, 112
    %v1094 = vpop.permute.xlu0 %1093
    %v1096 = vmul.f32 %v1091, %v1094
    %v1097 = vmul.f32 %v1080, %v964
    %v1098 = vadd.f32 %v1096, %v1097
    %v1099 = vsel %vm370, %v1068, %v1065
    %v1100 = vsel %vm363, %v1098, %v964
    %1102 = vrot.lane.b32.xlu0 %v1099, 112
    %v1103 = vpop.permute.xlu0 %1102
    %v1105 = vsel %vm222, %v1103, %v1100
    %v1107 = vsel %vm74, %v1105, 0
    %1109 = vmatprep.subr.mxu0 0.0
    %1110 = vmatpush1.msra.mxu0 0.0
    %1111 = vmatprep.subr.mxu0 0.0
    %1112 = vmatpush1.msra.mxu0 0.0
    %1113 = vmatprep.subr.mxu0 0.0
    %1114 = vmatpush1.msra.mxu0 0.0
    %1115 = vmatprep.subr.mxu0 0.0
    %1116 = vmatpush1.msra.mxu0 0.0
    %1117 = vmatprep.subr.mxu0 0.0
    %1118 = vmatpush1.msra.mxu0 0.0
    %1119 = vmatprep.subr.mxu0 0.0
    %1120 = vmatpush1.msra.mxu0 0.0
    %1121 = vmatprep.subr.mxu0 0.0
    %1122 = vmatpush1.msra.mxu0 0.0
    %1123 = vmatprep.subr.mxu0 0.0
    %1124 = vmatpush1.msra.mxu0 0.0
    %1125 = vmatprep.subr.mxu0 0.0
    %1126 = vmatpush1.msra.mxu0 0.0
    %1127 = vmatprep.subr.mxu0 0.0
    %1128 = vmatpush1.msra.mxu0 0.0
    %1129 = vmatprep.subr.mxu0 0.0
    %1130 = vmatpush1.msra.mxu0 0.0
    %1131 = vmatprep.subr.mxu0 0.0
    %1132 = vmatpush1.msra.mxu0 0.0
    %1133 = vmatprep.subr.mxu0 0.0
    %1134 = vmatpush1.msra.mxu0 %v65
    %1135 = vmatprep.subr.mxu0 0.0
    %1136 = vmatpush1.msra.mxu0 %v64
    %1137 = vmatprep.subr.mxu0 0.0
    %1138 = vmatpush1.msra.mxu0 %v63
    %1139 = vmatprep.subr.mxu0 0.0
    %1140 = vmatpush1.msra.mxu0 %v62
    %1141 = vmatprep.subr.mxu0 0.0
    %1142 = vmatpush2.msra.mxu0 0.0
    %1143 = vmatprep.subr.mxu0 0.0
    %1144 = vmatpush2.msra.mxu0 0.0
    %1145 = vmatprep.subr.mxu0 0.0
    %1146 = vmatpush2.msra.mxu0 0.0
    %1147 = vmatprep.subr.mxu0 0.0
    %1148 = vmatpush2.msra.mxu0 0.0
    %1149 = vmatprep.subr.mxu0 0.0
    %1150 = vmatpush2.msra.mxu0 0.0
    %1151 = vmatprep.subr.mxu0 0.0
    %1152 = vmatpush2.msra.mxu0 0.0
    %1153 = vmatprep.subr.mxu0 0.0
    %1154 = vmatpush2.msra.mxu0 0.0
    %1155 = vmatprep.subr.mxu0 0.0
    %1156 = vmatpush2.msra.mxu0 0.0
    %1157 = vmatprep.subr.mxu0 0.0
    %1158 = vmatpush2.msra.mxu0 0.0
    %1159 = vmatprep.subr.mxu0 0.0
    %1160 = vmatpush2.msra.mxu0 0.0
    %1161 = vmatprep.subr.mxu0 0.0
    %1162 = vmatpush2.msra.mxu0 0.0
    %1163 = vmatprep.subr.mxu0 0.0
    %1164 = vmatpush2.msra.mxu0 0.0
    %1165 = vmatprep.subr.mxu0 0.0
    %1166 = vmatpush2.msra.mxu0 0.0
    %1167 = vmatprep.subr.mxu0 0.0
    %1168 = vmatpush2.msra.mxu0 0.0
    %1169 = vmatprep.subr.mxu0 0.0
    %1170 = vmatpush2.msra.mxu0 0.0
    %1171 = vmatprep.subr.mxu0 0.0
    %1172 = vmatpush2.msra.mxu0 0.0
    %1173 = vmatprep.mubr.f32.mxu0 0.0
    %1174 = vmatmul.mubr.f32.gmra.mxu0 %v1107
    %v1175 = vpop.f32.mrf.mxu0
    %v1176 = vadd.f32 %v72, %v1175
    %v1177 = vpop.f32.mrf.mxu0
    %1178 = vdwg.mxu0
    %s1179 = scalar_lea.vmem [#allocation5], 56
    %v1180 = vld [vmem:[%s1179] sm:$0xff]
    %v1181 = vadd.f32 %v1180, %v1176
    %v1182 = vxor.u32 %v1181, 2147483648
    %v1183 = vmul.f32 %v1182, 1.442695
    %v1184 = vpow.pop %v1183
    %v1185 = vadd.f32 %v1184, 1.0
    %v1186 = vrcp.pop %v1185
    %v1187 = vmul.f32 1.0, %v1186
    %1189 = vrot.lane.b32.xlu0 %v1176, 96
    %v1190 = vpop.permute.xlu0 %1189
    %v1192 = vmul.f32 %v1187, %v1190
    %1194 = vrot.lane.b32.xlu0 %v1192, 32
    %v1195 = vpop.permute.xlu0 %1194
    %v1197 = vadd.f32 %v1180, %v1195
    %v1198 = vtanh.pop %v1197
    %v1199 = vsub.f32 1.0, %v1187
    %1201 = vrot.lane.b32.xlu0 %v1198, 112
    %v1202 = vpop.permute.xlu0 %1201
    %v1204 = vmul.f32 %v1199, %v1202
    %1205 = vrot.lane.b32.xlu0 %v1105, 16
    %v1206 = vpop.permute.xlu0 %1205
    %v1208 = vmul.f32 %v1187, %v1206
    %v1209 = vadd.f32 %v1204, %v1208
    %s1210 = scalar_lea.vmem [#allocation2], 56
    %v1211 = vld [vmem:[%s1210] sm:$0xff]
    %1212 = vrot.lane.b32.xlu0 %v1176, 80
    %v1213 = vpop.permute.xlu0 %1212
    %v1215 = vadd.f32 %v1211, %v1213
    %v1216 = vxor.u32 %v1215, 2147483648
    %v1217 = vmul.f32 %v1216, 1.442695
    %v1218 = vpow.pop %v1217
    %v1219 = vadd.f32 %v1218, 1.0
    %v1220 = vrcp.pop %v1219
    %v1221 = vmul.f32 1.0, %v1220
    %1222 = vrot.lane.b32.xlu0 %v1176, 48
    %v1223 = vpop.permute.xlu0 %1222
    %v1225 = vmul.f32 %v1221, %v1223
    %1227 = vrot.lane.b32.xlu0 %v1225, 32
    %v1228 = vpop.permute.xlu0 %1227
    %v1230 = vadd.f32 %v1211, %v1228
    %v1231 = vtanh.pop %v1230
    %v1232 = vsub.f32 1.0, %v1221
    %1234 = vrot.lane.b32.xlu0 %v1231, 112
    %v1235 = vpop.permute.xlu0 %1234
    %v1237 = vmul.f32 %v1232, %v1235
    %v1238 = vmul.f32 %v1221, %v1105
    %v1239 = vadd.f32 %v1237, %v1238
    %v1240 = vsel %vm216, %v1209, %v1206
    %v1241 = vsel %vm209, %v1239, %v1105
    %1243 = vrot.lane.b32.xlu0 %v1240, 112
    %v1244 = vpop.permute.xlu0 %1243
    %v1246 = vsel %vm222, %v1244, %v1241
    %1247 = vst.msk [vmem:[#allocation8] sm:$0xff] %vm74, %v1246
    // Predicated region
    $region34: #{tpu_custom_call.1} parent=1 // pred_check
      _
    $region35: #{tpu_custom_call.1} parent=1 // pred_check_branch
      %1249 = sbr.rel (0) target = $region37
    $region36: #{tpu_custom_call.1} parent=1 // pred_region
      %s1251 = ssub.s32 128, 128
      %1252 = vsyncadd [#allocation4], %s1251
      %s1254 = sshll.u32 [#allocation8], 4
      %s1255 = int_to_ptr.vmem [resolvable:$true] %s1254
      %1257 = dma.vmem_to_hbm [thread:$0]  %s1255, 128, %s5, [#allocation4]
    $region37: #{tpu_custom_call.1} parent=1 // pred_fallthru
      _
    // Predicated region
    $region38: #{tpu_custom_call.1} parent=1 // pred_check
      _
    $region39: #{tpu_custom_call.1} parent=1 // pred_check_branch
      %1259 = sbr.rel (0) target = $region41
    $region40: #{tpu_custom_call.1} parent=1 // pred_region
      %1260 = dma.done [#allocation4], 128
    $region41: #{tpu_custom_call.1} parent=1 // pred_fallthru
      _
    %1261 = vsyncpa [#allocation3], 1
    %1262 = vsyncpa [#allocation6], 1
    %1263 = vsyncpa [#allocation4], 1

</llo_original>
